<compile_context>
chip_gen: v5e
topology: v5e:2x2
jax: 0.10.0
libtpu: 0.0.40
codegen_flags: <defaults>
</compile_context>

<pallas_src>
import functools

import jax
import jax.numpy as jnp
from jax.experimental import pallas as pl
from jax.experimental.pallas import tpu as pltpu


NUM_HEADS = 4


def _round_up(x, m):
    return ((x + m - 1) // m) * m


# ----------------------------------------------------------------------------
# Pallas kernel: fused FC extractor + attention + (fused) predictor heads
# ----------------------------------------------------------------------------
def roi_attention_box_head_kernel(
    pooled_all_ref,            # [N_all_pad, Cin]  bf16 (current rows first)
    fc6_w_ref, fc6_b_ref,      # [Cin, D] bf16, [1, D] f32
    fc7_w_ref, fc7_b_ref,      # [D, D]   bf16, [1, D] f32
    wqkv_ref,                  # [D, 3D]  bf16 (Wq | Wk | Wv, lane-concat)
    wo_ref,                    # [H, dh, D] bf16 (Wo pre-split per head)
    head_w_ref, head_b_ref,    # [D, OUT_PAD] bf16, [1, OUT_PAD] f32 (cls|box)
    x_out_ref,                 # [N_cur_pad, D]       f32
    head_out_ref,              # [N_cur_pad, OUT_PAD] f32
    *, n_cur, n_cur_pad, n_mem, n_all_pad, num_heads,
):
    f32 = jnp.float32
    bf16 = jnp.bfloat16

    # --- FC stack once on the concatenated (cur + ref) proposal features -----
    h = jnp.dot(pooled_all_ref[...], fc6_w_ref[...], preferred_element_type=f32)
    h = jnp.maximum(h + fc6_b_ref[...], 0.0)
    h = jnp.dot(h.astype(bf16), fc7_w_ref[...], preferred_element_type=f32)
    allf = jnp.maximum(h + fc7_b_ref[...], 0.0)          # [N_all_pad, D] f32
    allf_b = allf.astype(bf16)

    d_model = fc7_w_ref.shape[1]
    dh = d_model // num_heads
    scale = 1.0 / (dh ** 0.5)

    # Sublane-aligned row slice (n_cur_pad is a multiple of 8) — free view.
    cur = allf[:n_cur_pad, :]                            # f32 (residual path)

    # --- Fused Q/K/V projection: one wide MXU pass, lane-aligned slices ------
    qkv = jnp.dot(allf_b, wqkv_ref[...],
                  preferred_element_type=f32).astype(bf16)   # [N_all_pad, 3D]
    q = qkv[:n_cur_pad, 0:d_model]                       # [Nq, D] bf16
    k = qkv[:, d_model:2 * d_model]                      # [Na, D] bf16
    v = qkv[:, 2 * d_model:3 * d_model]                  # [Na, D] bf16

    # Static key-validity mask — only materialized if rows were padded.
    mask_bias = None
    if (n_cur_pad != n_cur) or (n_all_pad != n_cur_pad + n_mem):
        idx = jax.lax.broadcasted_iota(jnp.int32, (1, n_all_pad), 1)
        valid = jnp.logical_or(
            idx < n_cur,
            jnp.logical_and(idx >= n_cur_pad, idx < n_cur_pad + n_mem))
        mask_bias = jnp.where(valid, 0.0, -1e30).astype(f32)     # [1, N_all_pad]

    # dot_general dimension numbers: NT (A @ B^T, no explicit transpose) and NN
    nt = (((1,), (1,)), ((), ()))
    nn = (((1,), (0,)), ((), ()))

    # --- Multi-head attention; Wo folded per head (no lane-axis concat) ------
    attn = jnp.zeros((n_cur_pad, d_model), dtype=f32)
    for hi in range(num_heads):
        lo, hi_ = hi * dh, (hi + 1) * dh
        qh = q[:, lo:hi_]                                  # [Nq,  dh] bf16
        kh = k[:, lo:hi_]                                  # [Na,  dh] bf16
        vh = v[:, lo:hi_]                                  # [Na,  dh] bf16

        s = jax.lax.dot_general(qh, kh, nt, preferred_element_type=f32) * scale
        if mask_bias is not None:
            s = s + mask_bias
        s = s - jnp.max(s, axis=-1, keepdims=True)
        p = jnp.exp(s)
        p = p * pl.reciprocal(jnp.sum(p, axis=-1, keepdims=True), approx=True)

        pv = jax.lax.dot_general(p.astype(bf16), vh, nn,
                                 preferred_element_type=f32)        # [Nq, dh]
        attn = attn + jax.lax.dot_general(pv.astype(bf16), wo_ref[hi], nn,
                                          preferred_element_type=f32)  # [Nq, D]

    # --- Residual + fused predictor heads (single lane-dense 128-wide store) -
    x = cur + attn
    x_out_ref[...] = x
    head_out_ref[...] = (
        jnp.dot(x.astype(bf16), head_w_ref[...], preferred_element_type=f32)
        + head_b_ref[...])


def roi_attention_box_head(pooled_cur, pooled_mem, params, num_heads=NUM_HEADS):
    """Fused Pallas forward. Returns (x, class_logits, box_regression)."""
    bf16 = jnp.bfloat16
    f32 = jnp.float32

    n_cur, cin = pooled_cur.shape
    n_mem = pooled_mem.shape[0]
    d = params["fc7_w"].shape[1]
    n_cls = params["cls_w"].shape[1]
    n_box = params["box_w"].shape[1]
    dh = d // num_heads

    # Pad ROI rows to sublane multiples; padded key rows are masked in-kernel.
    n_cur_pad = _round_up(n_cur, 8)
    n_mem_pad = _round_up(n_mem, 8)
    n_all_pad = n_cur_pad + n_mem_pad

    def pad_rows(a, rows):
        extra = rows - a.shape[0]
        return jnp.pad(a, ((0, extra), (0, 0))) if extra else a

    pooled_all = jnp.concatenate(
        [pad_rows(pooled_cur, n_cur_pad), pad_rows(pooled_mem, n_mem_pad)],
        axis=0).astype(bf16)

    # Fuse Q/K/V projections into one [D, 3D] weight (one wide MXU pass).
    wqkv = jnp.concatenate(
        [params["wq"], params["wk"], params["wv"]], axis=1).astype(bf16)

    # Pre-split Wo per head: concat(heads) @ Wo == sum_h pv_h @ Wo[h*dh:(h+1)*dh]
    wo3 = params["wo"].reshape(num_heads, dh, d).astype(bf16)

    # Fuse cls + box predictors into one lane-padded (multiple-of-128) weight.
    n_out = n_cls + n_box
    n_out_pad = _round_up(n_out, 128)
    head_w = jnp.pad(jnp.concatenate([params["cls_w"], params["box_w"]], axis=1),
                     ((0, 0), (0, n_out_pad - n_out))).astype(bf16)
    head_b = jnp.pad(jnp.concatenate([params["cls_b"], params["box_b"]], axis=1),
                     ((0, 0), (0, n_out_pad - n_out))).astype(f32)

    args = [
        pooled_all,
        params["fc6_w"].astype(bf16), params["fc6_b"].astype(f32),
        params["fc7_w"].astype(bf16), params["fc7_b"].astype(f32),
        wqkv, wo3,
        head_w, head_b,
    ]

    def full_spec(shape):
        return pl.BlockSpec(shape, lambda i, _n=len(shape): (0,) * _n)

    in_specs = [full_spec(a.shape) for a in args]
    out_shape = (
        jax.ShapeDtypeStruct((n_cur_pad, d), f32),
        jax.ShapeDtypeStruct((n_cur_pad, n_out_pad), f32),
    )
    out_specs = (
        full_spec((n_cur_pad, d)),
        full_spec((n_cur_pad, n_out_pad)),
    )

    kernel = functools.partial(
        roi_attention_box_head_kernel,
        n_cur=n_cur, n_cur_pad=n_cur_pad, n_mem=n_mem,
        n_all_pad=n_all_pad, num_heads=num_heads)

    x_pad, head_pad = pl.pallas_call(
        kernel,
        grid=(1,),
        in_specs=in_specs,
        out_specs=out_specs,
        out_shape=out_shape,
        compiler_params=pltpu.CompilerParams(
            dimension_semantics=("arbitrary",),
        ),
    )(*args)

    x = x_pad[:n_cur]
    class_logits = head_pad[:n_cur, :n_cls]
    box_regression = head_pad[:n_cur, n_cls:n_cls + n_box]
    return x, class_logits, box_regression


# ----------------------------------------------------------------------------
# Plain-JAX reference (f32) for numerical validation
# ----------------------------------------------------------------------------
def reference_forward(pooled_cur, pooled_mem, params, num_heads=NUM_HEADS):
    def fc(p):
        h = jnp.maximum(p @ params["fc6_w"] + params["fc6_b"], 0.0)
        return jnp.maximum(h @ params["fc7_w"] + params["fc7_b"], 0.0)

    cur = fc(pooled_cur)
    mem = fc(pooled_mem)
    allf = jnp.concatenate([cur, mem], axis=0)
    q = cur @ params["wq"]
    k = allf @ params["wk"]
    v = allf @ params["wv"]
    d = q.shape[-1]
    dh = d // num_heads
    scale = dh ** -0.5
    outs = []
    for h in range(num_heads):
        qh, kh, vh = (t[:, h * dh:(h + 1) * dh] for t in (q, k, v))
        s = qh @ kh.T * scale
        p = jax.nn.softmax(s, axis=-1)
        outs.append(p @ vh)
    attn = jnp.concatenate(outs, axis=-1) @ params["wo"]
    x = cur + attn
    cls = x @ params["cls_w"] + params["cls_b"]
    box = x @ params["box_w"] + params["box_b"]
    return x, cls, box


# ----------------------------------------------------------------------------
# Plain-JAX glue: simple ROIAlign-style bilinear pooling (NCHW feature maps)
# ----------------------------------------------------------------------------
def roi_align(feat, boxes, pool):
    """feat: [C, H, W], boxes: [N, 4] (x1, y1, x2, y2) in feature-map coords.
    Returns [N, C, pool, pool] via bilinear grid sampling."""
    c, h, w = feat.shape

    def one(box):
        x1, y1, x2, y2 = box
        ys = y1 + (jnp.arange(pool, dtype=jnp.float32) + 0.5) / pool * (y2 - y1)
        xs = x1 + (jnp.arange(pool, dtype=jnp.float32) + 0.5) / pool * (x2 - x1)
        y0 = jnp.clip(jnp.floor(ys), 0, h - 2).astype(jnp.int32)
        x0 = jnp.clip(jnp.floor(xs), 0, w - 2).astype(jnp.int32)
        wy = (ys - y0)[None, :, None]
        wx = (xs - x0)[None, None, :]
        f00 = feat[:, y0][:, :, x0]
        f01 = feat[:, y0][:, :, x0 + 1]
        f10 = feat[:, y0 + 1][:, :, x0]
        f11 = feat[:, y0 + 1][:, :, x0 + 1]
        return (f00 * (1 - wy) * (1 - wx) + f01 * (1 - wy) * wx
                + f10 * wy * (1 - wx) + f11 * wy * wx)

    return jax.vmap(one)(boxes)


def make_boxes(key, n, h, w):
    k1, k2, k3, k4 = jax.random.split(key, 4)
    x1 = jax.random.uniform(k1, (n,), minval=0.0, maxval=w - 6.0)
    y1 = jax.random.uniform(k2, (n,), minval=0.0, maxval=h - 6.0)
    bw = jax.random.uniform(k3, (n,), minval=3.0, maxval=6.0)
    bh = jax.random.uniform(k4, (n,), minval=3.0, maxval=6.0)
    x2 = jnp.clip(x1 + bw, 0.0, w - 1.0)
    y2 = jnp.clip(y1 + bh, 0.0, h - 1.0)
    return jnp.stack([x1, y1, x2, y2], axis=-1)


# ----------------------------------------------------------------------------
# main
# ----------------------------------------------------------------------------
if __name__ == "__main__":
    key = jax.random.PRNGKey(0)

    # Small config consistent with the module:
    #   in_channels C=4, pooler resolution P=8 -> flattened ROI dim 256
    #   representation_size D=128, 4 attention heads, num_classes=8
    C, H, W = 4, 16, 16
    P = 8
    CIN = C * P * P          # 256
    D = 128
    N_CLS = 8
    N_CUR = 16               # current-frame proposals
    N_MEM = 48               # reference-frame ("memory") proposals

    keys = jax.random.split(key, 20)

    # features: one level, two frames (current + reference), NCHW
    features = jax.random.normal(keys[0], (2, C, H, W), dtype=jnp.float32)

    boxes_cur = make_boxes(keys[1], N_CUR, H, W)
    boxes_mem = make_boxes(keys[2], N_MEM, H, W)

    # ROIAlign (glue) + flatten to [N, C*P*P]
    pooled_cur = roi_align(features[0], boxes_cur, P).reshape(N_CUR, CIN)
    pooled_mem = roi_align(features[1], boxes_mem, P).reshape(N_MEM, CIN)

    def lin(k, fan_in, shape):
        return (jax.random.normal(k, shape, dtype=jnp.float32)
                * (1.0 / jnp.sqrt(jnp.float32(fan_in))))

    params = {
        "fc6_w": lin(keys[3], CIN, (CIN, D)),
        "fc6_b": jnp.zeros((1, D), jnp.float32),
        "fc7_w": lin(keys[4], D, (D, D)),
        "fc7_b": jnp.zeros((1, D), jnp.float32),
        "wq": lin(keys[5], D, (D, D)),
        "wk": lin(keys[6], D, (D, D)),
        "wv": lin(keys[7], D, (D, D)),
        "wo": lin(keys[8], D, (D, D)),
        "cls_w": lin(keys[9], D, (D, N_CLS)),
        "cls_b": jnp.zeros((1, N_CLS), jnp.float32),
        "box_w": lin(keys[10], D, (D, 4 * N_CLS)),
        "box_b": jnp.zeros((1, 4 * N_CLS), jnp.float32),
    }

    fwd = jax.jit(roi_attention_box_head)
    x, class_logits, box_regression = fwd(pooled_cur, pooled_mem, params)
    jax.block_until_ready((x, class_logits, box_regression))

    assert x.shape == (N_CUR, D)
    assert class_logits.shape == (N_CUR, N_CLS)
    assert box_regression.shape == (N_CUR, 4 * N_CLS)
    assert bool(jnp.all(jnp.isfinite(x)))
    assert bool(jnp.all(jnp.isfinite(class_logits)))
    assert bool(jnp.all(jnp.isfinite(box_regression)))

    # Loose numerical check vs f32 reference (kernel feeds the MXU bf16).
    x_ref, cls_ref, box_ref = reference_forward(pooled_cur, pooled_mem, params)
    for got, ref in ((x, x_ref), (class_logits, cls_ref), (box_regression, box_ref)):
        denom = jnp.max(jnp.abs(ref)) + 1e-6
        rel = float(jnp.max(jnp.abs(got - ref)) / denom)
        assert rel < 0.1, f"relative error too high: {rel}"

    print("KERNEL_OK")
</pallas_src>

<mosaic_0001>
module attributes {stable_mosaic.version = 11 : i64} {
  func.func @roi_attention_box_head_kernel(%arg0: i32, %arg1: memref<64x256xbf16, #tpu.memory_space<vmem>>, %arg2: memref<256x128xbf16, #tpu.memory_space<vmem>>, %arg3: memref<1x128xf32, #tpu.memory_space<vmem>>, %arg4: memref<128x128xbf16, #tpu.memory_space<vmem>>, %arg5: memref<1x128xf32, #tpu.memory_space<vmem>>, %arg6: memref<128x384xbf16, #tpu.memory_space<vmem>>, %arg7: memref<4x32x128xbf16, #tpu.memory_space<vmem>>, %arg8: memref<128x128xbf16, #tpu.memory_space<vmem>>, %arg9: memref<1x128xf32, #tpu.memory_space<vmem>>, %arg10: memref<16x128xf32, #tpu.memory_space<vmem>>, %arg11: memref<16x128xf32, #tpu.memory_space<vmem>>) attributes {dimension_semantics = [#tpu.dimension_semantics<arbitrary>], iteration_bounds = array<i64: 1>, scalar_prefetch = 0 : i64, scratch_operands = 0 : i64, tpu.core_type = #tpu.core_type<tc>, window_params = [{pipeline_mode = #tpu.pipeline_mode<synchronous>, transform_indices = @transform_0, window_bounds = array<i64: 64, 256>}, {pipeline_mode = #tpu.pipeline_mode<synchronous>, transform_indices = @transform_1, window_bounds = array<i64: 256, 128>}, {pipeline_mode = #tpu.pipeline_mode<synchronous>, transform_indices = @transform_2, window_bounds = array<i64: 1, 128>}, {pipeline_mode = #tpu.pipeline_mode<synchronous>, transform_indices = @transform_3, window_bounds = array<i64: 128, 128>}, {pipeline_mode = #tpu.pipeline_mode<synchronous>, transform_indices = @transform_4, window_bounds = array<i64: 1, 128>}, {pipeline_mode = #tpu.pipeline_mode<synchronous>, transform_indices = @transform_5, window_bounds = array<i64: 128, 384>}, {pipeline_mode = #tpu.pipeline_mode<synchronous>, transform_indices = @transform_6, window_bounds = array<i64: 4, 32, 128>}, {pipeline_mode = #tpu.pipeline_mode<synchronous>, transform_indices = @transform_7, window_bounds = array<i64: 128, 128>}, {pipeline_mode = #tpu.pipeline_mode<synchronous>, transform_indices = @transform_8, window_bounds = array<i64: 1, 128>}, {pipeline_mode = #tpu.pipeline_mode<synchronous>, transform_indices = @transform_9, window_bounds = array<i64: 16, 128>}, {pipeline_mode = #tpu.pipeline_mode<synchronous>, transform_indices = @transform_10, window_bounds = array<i64: 16, 128>}]} {
    %c0 = arith.constant 0 : index
    %c0_0 = arith.constant 0 : index
    %0 = vector.load %arg1[%c0, %c0_0] : memref<64x256xbf16, #tpu.memory_space<vmem>>, vector<64x256xbf16>
    %c0_1 = arith.constant 0 : index
    %c0_2 = arith.constant 0 : index
    %1 = vector.load %arg2[%c0_1, %c0_2] : memref<256x128xbf16, #tpu.memory_space<vmem>>, vector<256x128xbf16>
    %cst = arith.constant dense<0.000000e+00> : vector<64x128xf32>
    %2 = tpu.matmul %0, %1, %cst {dimension_numbers = #tpu.dot_dimension_numbers<[1], [0], [0], [1], [0, 0, 1, 1], [], []>} : vector<64x256xbf16>, vector<256x128xbf16>, vector<64x128xf32> -> vector<64x128xf32>
    %c0_3 = arith.constant 0 : index
    %c0_4 = arith.constant 0 : index
    %3 = vector.load %arg3[%c0_3, %c0_4] : memref<1x128xf32, #tpu.memory_space<vmem>>, vector<1x128xf32>
    %4 = vector.broadcast %3 : vector<1x128xf32> to vector<64x128xf32>
    %5 = arith.addf %2, %4 : vector<64x128xf32>
    %cst_5 = arith.constant 0.000000e+00 : f32
    %6 = vector.broadcast %cst_5 : f32 to vector<64x128xf32>
    %7 = arith.maximumf %5, %6 : vector<64x128xf32>
    %8 = arith.truncf %7 : vector<64x128xf32> to vector<64x128xbf16>
    %c0_6 = arith.constant 0 : index
    %c0_7 = arith.constant 0 : index
    %9 = vector.load %arg4[%c0_6, %c0_7] : memref<128x128xbf16, #tpu.memory_space<vmem>>, vector<128x128xbf16>
    %cst_8 = arith.constant dense<0.000000e+00> : vector<64x128xf32>
    %10 = tpu.matmul %8, %9, %cst_8 {dimension_numbers = #tpu.dot_dimension_numbers<[1], [0], [0], [1], [0, 0, 1, 1], [], []>} : vector<64x128xbf16>, vector<128x128xbf16>, vector<64x128xf32> -> vector<64x128xf32>
    %c0_9 = arith.constant 0 : index
    %c0_10 = arith.constant 0 : index
    %11 = vector.load %arg5[%c0_9, %c0_10] : memref<1x128xf32, #tpu.memory_space<vmem>>, vector<1x128xf32>
    %12 = vector.broadcast %11 : vector<1x128xf32> to vector<64x128xf32>
    %13 = arith.addf %10, %12 : vector<64x128xf32>
    %cst_11 = arith.constant 0.000000e+00 : f32
    %14 = vector.broadcast %cst_11 : f32 to vector<64x128xf32>
    %15 = arith.maximumf %13, %14 : vector<64x128xf32>
    %16 = arith.truncf %15 : vector<64x128xf32> to vector<64x128xbf16>
    %17 = vector.extract_strided_slice %15 {offsets = [0, 0], sizes = [16, 128], strides = [1, 1]} : vector<64x128xf32> to vector<16x128xf32>
    %c0_12 = arith.constant 0 : index
    %c0_13 = arith.constant 0 : index
    %18 = vector.load %arg6[%c0_12, %c0_13] : memref<128x384xbf16, #tpu.memory_space<vmem>>, vector<128x384xbf16>
    %cst_14 = arith.constant dense<0.000000e+00> : vector<64x384xf32>
    %19 = tpu.matmul %16, %18, %cst_14 {dimension_numbers = #tpu.dot_dimension_numbers<[1], [0], [0], [1], [0, 0, 1, 1], [], []>} : vector<64x128xbf16>, vector<128x384xbf16>, vector<64x384xf32> -> vector<64x384xf32>
    %20 = arith.truncf %19 : vector<64x384xf32> to vector<64x384xbf16>
    %21 = vector.extract_strided_slice %20 {offsets = [0, 0], sizes = [16, 128], strides = [1, 1]} : vector<64x384xbf16> to vector<16x128xbf16>
    %22 = vector.extract_strided_slice %20 {offsets = [0, 128], sizes = [64, 128], strides = [1, 1]} : vector<64x384xbf16> to vector<64x128xbf16>
    %23 = vector.extract_strided_slice %20 {offsets = [0, 256], sizes = [64, 128], strides = [1, 1]} : vector<64x384xbf16> to vector<64x128xbf16>
    %cst_15 = arith.constant 0.000000e+00 : f32
    %24 = vector.broadcast %cst_15 : f32 to vector<16x128xf32>
    %25 = vector.extract_strided_slice %21 {offsets = [0, 0], sizes = [16, 32], strides = [1, 1]} : vector<16x128xbf16> to vector<16x32xbf16>
    %26 = vector.extract_strided_slice %22 {offsets = [0, 0], sizes = [64, 32], strides = [1, 1]} : vector<64x128xbf16> to vector<64x32xbf16>
    %27 = vector.extract_strided_slice %23 {offsets = [0, 0], sizes = [64, 32], strides = [1, 1]} : vector<64x128xbf16> to vector<64x32xbf16>
    %cst_16 = arith.constant dense<0.000000e+00> : vector<16x64xf32>
    %28 = tpu.matmul %25, %26, %cst_16 {dimension_numbers = #tpu.dot_dimension_numbers<[1], [1], [0], [0], [0, 0, 1, 0], [], []>} : vector<16x32xbf16>, vector<64x32xbf16>, vector<16x64xf32> -> vector<16x64xf32>
    %cst_17 = arith.constant 0.176776692 : f32
    %29 = vector.broadcast %cst_17 : f32 to vector<16x64xf32>
    %30 = arith.mulf %28, %29 : vector<16x64xf32>
    %cst_18 = arith.constant dense<0xFF800000> : vector<16xf32>
    %31 = vector.multi_reduction <maximumf>, %30, %cst_18 [1] : vector<16x64xf32> to vector<16xf32>
    %32 = vector.shape_cast %31 : vector<16xf32> to vector<16x1xf32>
    %33 = vector.broadcast %32 : vector<16x1xf32> to vector<16x64xf32>
    %34 = arith.subf %30, %33 : vector<16x64xf32>
    %35 = math.exp %34 : vector<16x64xf32>
    %cst_19 = arith.constant dense<0.000000e+00> : vector<16xf32>
    %36 = vector.multi_reduction <add>, %35, %cst_19 [1] : vector<16x64xf32> to vector<16xf32>
    %37 = vector.shape_cast %36 : vector<16xf32> to vector<16x1xf32>
    %38 = tpu.reciprocal %37 {approx = true} : vector<16x1xf32> -> vector<16x1xf32>
    %39 = vector.broadcast %38 : vector<16x1xf32> to vector<16x64xf32>
    %40 = arith.mulf %35, %39 : vector<16x64xf32>
    %41 = arith.truncf %40 : vector<16x64xf32> to vector<16x64xbf16>
    %cst_20 = arith.constant dense<0.000000e+00> : vector<16x32xf32>
    %42 = tpu.matmul %41, %27, %cst_20 {dimension_numbers = #tpu.dot_dimension_numbers<[1], [0], [0], [1], [0, 0, 1, 1], [], []>} : vector<16x64xbf16>, vector<64x32xbf16>, vector<16x32xf32> -> vector<16x32xf32>
    %43 = arith.truncf %42 : vector<16x32xf32> to vector<16x32xbf16>
    %c0_21 = arith.constant 0 : index
    %c0_22 = arith.constant 0 : index
    %c0_23 = arith.constant 0 : index
    %44 = vector.load %arg7[%c0_21, %c0_22, %c0_23] : memref<4x32x128xbf16, #tpu.memory_space<vmem>>, vector<1x32x128xbf16>
    %45 = vector.shape_cast %44 : vector<1x32x128xbf16> to vector<32x128xbf16>
    %cst_24 = arith.constant dense<0.000000e+00> : vector<16x128xf32>
    %46 = tpu.matmul %43, %45, %cst_24 {dimension_numbers = #tpu.dot_dimension_numbers<[1], [0], [0], [1], [0, 0, 1, 1], [], []>} : vector<16x32xbf16>, vector<32x128xbf16>, vector<16x128xf32> -> vector<16x128xf32>
    %47 = arith.addf %24, %46 : vector<16x128xf32>
    %48 = vector.extract_strided_slice %21 {offsets = [0, 32], sizes = [16, 32], strides = [1, 1]} : vector<16x128xbf16> to vector<16x32xbf16>
    %49 = vector.extract_strided_slice %22 {offsets = [0, 32], sizes = [64, 32], strides = [1, 1]} : vector<64x128xbf16> to vector<64x32xbf16>
    %50 = vector.extract_strided_slice %23 {offsets = [0, 32], sizes = [64, 32], strides = [1, 1]} : vector<64x128xbf16> to vector<64x32xbf16>
    %cst_25 = arith.constant dense<0.000000e+00> : vector<16x64xf32>
    %51 = tpu.matmul %48, %49, %cst_25 {dimension_numbers = #tpu.dot_dimension_numbers<[1], [1], [0], [0], [0, 0, 1, 0], [], []>} : vector<16x32xbf16>, vector<64x32xbf16>, vector<16x64xf32> -> vector<16x64xf32>
    %cst_26 = arith.constant 0.176776692 : f32
    %52 = vector.broadcast %cst_26 : f32 to vector<16x64xf32>
    %53 = arith.mulf %51, %52 : vector<16x64xf32>
    %cst_27 = arith.constant dense<0xFF800000> : vector<16xf32>
    %54 = vector.multi_reduction <maximumf>, %53, %cst_27 [1] : vector<16x64xf32> to vector<16xf32>
    %55 = vector.shape_cast %54 : vector<16xf32> to vector<16x1xf32>
    %56 = vector.broadcast %55 : vector<16x1xf32> to vector<16x64xf32>
    %57 = arith.subf %53, %56 : vector<16x64xf32>
    %58 = math.exp %57 : vector<16x64xf32>
    %cst_28 = arith.constant dense<0.000000e+00> : vector<16xf32>
    %59 = vector.multi_reduction <add>, %58, %cst_28 [1] : vector<16x64xf32> to vector<16xf32>
    %60 = vector.shape_cast %59 : vector<16xf32> to vector<16x1xf32>
    %61 = tpu.reciprocal %60 {approx = true} : vector<16x1xf32> -> vector<16x1xf32>
    %62 = vector.broadcast %61 : vector<16x1xf32> to vector<16x64xf32>
    %63 = arith.mulf %58, %62 : vector<16x64xf32>
    %64 = arith.truncf %63 : vector<16x64xf32> to vector<16x64xbf16>
    %cst_29 = arith.constant dense<0.000000e+00> : vector<16x32xf32>
    %65 = tpu.matmul %64, %50, %cst_29 {dimension_numbers = #tpu.dot_dimension_numbers<[1], [0], [0], [1], [0, 0, 1, 1], [], []>} : vector<16x64xbf16>, vector<64x32xbf16>, vector<16x32xf32> -> vector<16x32xf32>
    %66 = arith.truncf %65 : vector<16x32xf32> to vector<16x32xbf16>
    %c1 = arith.constant 1 : index
    %c0_30 = arith.constant 0 : index
    %c0_31 = arith.constant 0 : index
    %67 = vector.load %arg7[%c1, %c0_30, %c0_31] : memref<4x32x128xbf16, #tpu.memory_space<vmem>>, vector<1x32x128xbf16>
    %68 = vector.shape_cast %67 : vector<1x32x128xbf16> to vector<32x128xbf16>
    %cst_32 = arith.constant dense<0.000000e+00> : vector<16x128xf32>
    %69 = tpu.matmul %66, %68, %cst_32 {dimension_numbers = #tpu.dot_dimension_numbers<[1], [0], [0], [1], [0, 0, 1, 1], [], []>} : vector<16x32xbf16>, vector<32x128xbf16>, vector<16x128xf32> -> vector<16x128xf32>
    %70 = arith.addf %47, %69 : vector<16x128xf32>
    %71 = vector.extract_strided_slice %21 {offsets = [0, 64], sizes = [16, 32], strides = [1, 1]} : vector<16x128xbf16> to vector<16x32xbf16>
    %72 = vector.extract_strided_slice %22 {offsets = [0, 64], sizes = [64, 32], strides = [1, 1]} : vector<64x128xbf16> to vector<64x32xbf16>
    %73 = vector.extract_strided_slice %23 {offsets = [0, 64], sizes = [64, 32], strides = [1, 1]} : vector<64x128xbf16> to vector<64x32xbf16>
    %cst_33 = arith.constant dense<0.000000e+00> : vector<16x64xf32>
    %74 = tpu.matmul %71, %72, %cst_33 {dimension_numbers = #tpu.dot_dimension_numbers<[1], [1], [0], [0], [0, 0, 1, 0], [], []>} : vector<16x32xbf16>, vector<64x32xbf16>, vector<16x64xf32> -> vector<16x64xf32>
    %cst_34 = arith.constant 0.176776692 : f32
    %75 = vector.broadcast %cst_34 : f32 to vector<16x64xf32>
    %76 = arith.mulf %74, %75 : vector<16x64xf32>
    %cst_35 = arith.constant dense<0xFF800000> : vector<16xf32>
    %77 = vector.multi_reduction <maximumf>, %76, %cst_35 [1] : vector<16x64xf32> to vector<16xf32>
    %78 = vector.shape_cast %77 : vector<16xf32> to vector<16x1xf32>
    %79 = vector.broadcast %78 : vector<16x1xf32> to vector<16x64xf32>
    %80 = arith.subf %76, %79 : vector<16x64xf32>
    %81 = math.exp %80 : vector<16x64xf32>
    %cst_36 = arith.constant dense<0.000000e+00> : vector<16xf32>
    %82 = vector.multi_reduction <add>, %81, %cst_36 [1] : vector<16x64xf32> to vector<16xf32>
    %83 = vector.shape_cast %82 : vector<16xf32> to vector<16x1xf32>
    %84 = tpu.reciprocal %83 {approx = true} : vector<16x1xf32> -> vector<16x1xf32>
    %85 = vector.broadcast %84 : vector<16x1xf32> to vector<16x64xf32>
    %86 = arith.mulf %81, %85 : vector<16x64xf32>
    %87 = arith.truncf %86 : vector<16x64xf32> to vector<16x64xbf16>
    %cst_37 = arith.constant dense<0.000000e+00> : vector<16x32xf32>
    %88 = tpu.matmul %87, %73, %cst_37 {dimension_numbers = #tpu.dot_dimension_numbers<[1], [0], [0], [1], [0, 0, 1, 1], [], []>} : vector<16x64xbf16>, vector<64x32xbf16>, vector<16x32xf32> -> vector<16x32xf32>
    %89 = arith.truncf %88 : vector<16x32xf32> to vector<16x32xbf16>
    %c2 = arith.constant 2 : index
    %c0_38 = arith.constant 0 : index
    %c0_39 = arith.constant 0 : index
    %90 = vector.load %arg7[%c2, %c0_38, %c0_39] : memref<4x32x128xbf16, #tpu.memory_space<vmem>>, vector<1x32x128xbf16>
    %91 = vector.shape_cast %90 : vector<1x32x128xbf16> to vector<32x128xbf16>
    %cst_40 = arith.constant dense<0.000000e+00> : vector<16x128xf32>
    %92 = tpu.matmul %89, %91, %cst_40 {dimension_numbers = #tpu.dot_dimension_numbers<[1], [0], [0], [1], [0, 0, 1, 1], [], []>} : vector<16x32xbf16>, vector<32x128xbf16>, vector<16x128xf32> -> vector<16x128xf32>
    %93 = arith.addf %70, %92 : vector<16x128xf32>
    %94 = vector.extract_strided_slice %21 {offsets = [0, 96], sizes = [16, 32], strides = [1, 1]} : vector<16x128xbf16> to vector<16x32xbf16>
    %95 = vector.extract_strided_slice %22 {offsets = [0, 96], sizes = [64, 32], strides = [1, 1]} : vector<64x128xbf16> to vector<64x32xbf16>
    %96 = vector.extract_strided_slice %23 {offsets = [0, 96], sizes = [64, 32], strides = [1, 1]} : vector<64x128xbf16> to vector<64x32xbf16>
    %cst_41 = arith.constant dense<0.000000e+00> : vector<16x64xf32>
    %97 = tpu.matmul %94, %95, %cst_41 {dimension_numbers = #tpu.dot_dimension_numbers<[1], [1], [0], [0], [0, 0, 1, 0], [], []>} : vector<16x32xbf16>, vector<64x32xbf16>, vector<16x64xf32> -> vector<16x64xf32>
    %cst_42 = arith.constant 0.176776692 : f32
    %98 = vector.broadcast %cst_42 : f32 to vector<16x64xf32>
    %99 = arith.mulf %97, %98 : vector<16x64xf32>
    %cst_43 = arith.constant dense<0xFF800000> : vector<16xf32>
    %100 = vector.multi_reduction <maximumf>, %99, %cst_43 [1] : vector<16x64xf32> to vector<16xf32>
    %101 = vector.shape_cast %100 : vector<16xf32> to vector<16x1xf32>
    %102 = vector.broadcast %101 : vector<16x1xf32> to vector<16x64xf32>
    %103 = arith.subf %99, %102 : vector<16x64xf32>
    %104 = math.exp %103 : vector<16x64xf32>
    %cst_44 = arith.constant dense<0.000000e+00> : vector<16xf32>
    %105 = vector.multi_reduction <add>, %104, %cst_44 [1] : vector<16x64xf32> to vector<16xf32>
    %106 = vector.shape_cast %105 : vector<16xf32> to vector<16x1xf32>
    %107 = tpu.reciprocal %106 {approx = true} : vector<16x1xf32> -> vector<16x1xf32>
    %108 = vector.broadcast %107 : vector<16x1xf32> to vector<16x64xf32>
    %109 = arith.mulf %104, %108 : vector<16x64xf32>
    %110 = arith.truncf %109 : vector<16x64xf32> to vector<16x64xbf16>
    %cst_45 = arith.constant dense<0.000000e+00> : vector<16x32xf32>
    %111 = tpu.matmul %110, %96, %cst_45 {dimension_numbers = #tpu.dot_dimension_numbers<[1], [0], [0], [1], [0, 0, 1, 1], [], []>} : vector<16x64xbf16>, vector<64x32xbf16>, vector<16x32xf32> -> vector<16x32xf32>
    %112 = arith.truncf %111 : vector<16x32xf32> to vector<16x32xbf16>
    %c3 = arith.constant 3 : index
    %c0_46 = arith.constant 0 : index
    %c0_47 = arith.constant 0 : index
    %113 = vector.load %arg7[%c3, %c0_46, %c0_47] : memref<4x32x128xbf16, #tpu.memory_space<vmem>>, vector<1x32x128xbf16>
    %114 = vector.shape_cast %113 : vector<1x32x128xbf16> to vector<32x128xbf16>
    %cst_48 = arith.constant dense<0.000000e+00> : vector<16x128xf32>
    %115 = tpu.matmul %112, %114, %cst_48 {dimension_numbers = #tpu.dot_dimension_numbers<[1], [0], [0], [1], [0, 0, 1, 1], [], []>} : vector<16x32xbf16>, vector<32x128xbf16>, vector<16x128xf32> -> vector<16x128xf32>
    %116 = arith.addf %93, %115 : vector<16x128xf32>
    %117 = arith.addf %17, %116 : vector<16x128xf32>
    %c0_49 = arith.constant 0 : index
    %c0_50 = arith.constant 0 : index
    %118 = vector.load %arg10[%c0_49, %c0_50] : memref<16x128xf32, #tpu.memory_space<vmem>>, vector<16x128xf32>
    tpu.vector_store %arg10[%c0_49, %c0_50], %117 {strides = array<i32>} : memref<16x128xf32, #tpu.memory_space<vmem>>, vector<16x128xf32>,
    %119 = arith.truncf %117 : vector<16x128xf32> to vector<16x128xbf16>
    %c0_51 = arith.constant 0 : index
    %c0_52 = arith.constant 0 : index
    %120 = vector.load %arg8[%c0_51, %c0_52] : memref<128x128xbf16, #tpu.memory_space<vmem>>, vector<128x128xbf16>
    %cst_53 = arith.constant dense<0.000000e+00> : vector<16x128xf32>
    %121 = tpu.matmul %119, %120, %cst_53 {dimension_numbers = #tpu.dot_dimension_numbers<[1], [0], [0], [1], [0, 0, 1, 1], [], []>} : vector<16x128xbf16>, vector<128x128xbf16>, vector<16x128xf32> -> vector<16x128xf32>
    %c0_54 = arith.constant 0 : index
    %c0_55 = arith.constant 0 : index
    %122 = vector.load %arg9[%c0_54, %c0_55] : memref<1x128xf32, #tpu.memory_space<vmem>>, vector<1x128xf32>
    %123 = vector.broadcast %122 : vector<1x128xf32> to vector<16x128xf32>
    %124 = arith.addf %121, %123 : vector<16x128xf32>
    %c0_56 = arith.constant 0 : index
    %c0_57 = arith.constant 0 : index
    %125 = vector.load %arg11[%c0_56, %c0_57] : memref<16x128xf32, #tpu.memory_space<vmem>>, vector<16x128xf32>
    tpu.vector_store %arg11[%c0_56, %c0_57], %124 {strides = array<i32>} : memref<16x128xf32, #tpu.memory_space<vmem>>, vector<16x128xf32>,
    return
  }
  func.func @transform_0(%arg0: i32) -> (i32, i32) {
    %c0_i32 = arith.constant 0 : i32
    %c0_i32_0 = arith.constant 0 : i32
    %c0_i32_1 = arith.constant 0 : i32
    return %c0_i32, %c0_i32_0 : i32, i32
  }
  func.func @transform_1(%arg0: i32) -> (i32, i32) {
    %c0_i32 = arith.constant 0 : i32
    %c0_i32_0 = arith.constant 0 : i32
    %c0_i32_1 = arith.constant 0 : i32
    return %c0_i32, %c0_i32_0 : i32, i32
  }
  func.func @transform_2(%arg0: i32) -> (i32, i32) {
    %c0_i32 = arith.constant 0 : i32
    %c0_i32_0 = arith.constant 0 : i32
    %c0_i32_1 = arith.constant 0 : i32
    return %c0_i32, %c0_i32_0 : i32, i32
  }
  func.func @transform_3(%arg0: i32) -> (i32, i32) {
    %c0_i32 = arith.constant 0 : i32
    %c0_i32_0 = arith.constant 0 : i32
    %c0_i32_1 = arith.constant 0 : i32
    return %c0_i32, %c0_i32_0 : i32, i32
  }
  func.func @transform_4(%arg0: i32) -> (i32, i32) {
    %c0_i32 = arith.constant 0 : i32
    %c0_i32_0 = arith.constant 0 : i32
    %c0_i32_1 = arith.constant 0 : i32
    return %c0_i32, %c0_i32_0 : i32, i32
  }
  func.func @transform_5(%arg0: i32) -> (i32, i32) {
    %c0_i32 = arith.constant 0 : i32
    %c0_i32_0 = arith.constant 0 : i32
    %c0_i32_1 = arith.constant 0 : i32
    return %c0_i32, %c0_i32_0 : i32, i32
  }
  func.func @transform_6(%arg0: i32) -> (i32, i32, i32) {
    %c0_i32 = arith.constant 0 : i32
    %c0_i32_0 = arith.constant 0 : i32
    %c0_i32_1 = arith.constant 0 : i32
    %c0_i32_2 = arith.constant 0 : i32
    return %c0_i32, %c0_i32_0, %c0_i32_1 : i32, i32, i32
  }
  func.func @transform_7(%arg0: i32) -> (i32, i32) {
    %c0_i32 = arith.constant 0 : i32
    %c0_i32_0 = arith.constant 0 : i32
    %c0_i32_1 = arith.constant 0 : i32
    return %c0_i32, %c0_i32_0 : i32, i32
  }
  func.func @transform_8(%arg0: i32) -> (i32, i32) {
    %c0_i32 = arith.constant 0 : i32
    %c0_i32_0 = arith.constant 0 : i32
    %c0_i32_1 = arith.constant 0 : i32
    return %c0_i32, %c0_i32_0 : i32, i32
  }
  func.func @transform_9(%arg0: i32) -> (i32, i32) {
    %c0_i32 = arith.constant 0 : i32
    %c0_i32_0 = arith.constant 0 : i32
    %c0_i32_1 = arith.constant 0 : i32
    return %c0_i32, %c0_i32_0 : i32, i32
  }
  func.func @transform_10(%arg0: i32) -> (i32, i32) {
    %c0_i32 = arith.constant 0 : i32
    %c0_i32_0 = arith.constant 0 : i32
    %c0_i32_1 = arith.constant 0 : i32
    return %c0_i32, %c0_i32_0 : i32, i32
  }
}

</mosaic_0001>

<llo_original>
// kernel: roi_attention_box_head.1
$region0: #{roi_attention_box_head.1}
  #allocation0 [shape = 'u32[]', space=smem, size = 0x4, offset = 0x4, fixed_abs, tag = 'smem constant byte address 0x4 - core index']
  #allocation1 [shape = 'u32[72,128]{1,0:T(1,128)}', space=vmem, size = 0x9000, scoped, tag = 'internal scratch']
  %s0 = inlined_call_operand.vmem [shape: bf16[64,256], index: 0, kind: input, shape index: {}]
  %s1 = inlined_call_operand.vmem [shape: bf16[256,128], index: 1, kind: input, shape index: {}]
  %s2 = inlined_call_operand.vmem [shape: f32[1,128], index: 2, kind: input, shape index: {}]
  %s3 = inlined_call_operand.vmem [shape: bf16[128,128], index: 3, kind: input, shape index: {}]
  %s4 = inlined_call_operand.vmem [shape: f32[1,128], index: 4, kind: input, shape index: {}]
  %s5 = inlined_call_operand.vmem [shape: bf16[128,384], index: 5, kind: input, shape index: {}]
  %s6 = inlined_call_operand.vmem [shape: bf16[4,32,128], index: 6, kind: input, shape index: {}]
  %s7 = inlined_call_operand.vmem [shape: bf16[128,128], index: 7, kind: input, shape index: {}]
  %s8 = inlined_call_operand.vmem [shape: f32[1,128], index: 8, kind: input, shape index: {}]
  %s9 = inlined_call_operand.hbm [shape: f32[16,128], index: 9, kind: output, shape index: {0}]
  %s10 = inlined_call_operand.vmem [shape: f32[16,128], index: 10, kind: output, shape index: {1}]
  %11 = xla_tuple %s9, %s10
  %s12 = sld [smem:[#allocation0]]
  $region54: #{roi_attention_box_head.1} parent=0
    _
  %s14 = ssub.s32 1, %s12
  %s15 = scalar_select 0, %s14, %s12
  $region1: #{roi_attention_box_head.1} parent=0
    #allocation2 [shape = 'u8[8192]{0}', space=vmem, size = 0x2000, scoped, tag = 'output window, operand 0, single buffered']
    #allocation3 [shape = 's32[1]{0}', space=sflag, size = 0x4, scoped, tag = 'scoped memory for roi_attention_box_head.1']
    %16 = vsyncpa [#allocation3], 0
    // Predicated region
    $region2: #{roi_attention_box_head.1} parent=1 // pred_check
      _
    $region3: #{roi_attention_box_head.1} parent=1 // pred_check_branch
      %18 = sbr.rel (0) target = $region5
    $region4: #{roi_attention_box_head.1} parent=1 // pred_region
      _
    $region5: #{roi_attention_box_head.1} parent=1 // pred_fallthru
      _
    // Predicated region
    $region6: #{roi_attention_box_head.1} parent=1 // pred_check
      _
    $region7: #{roi_attention_box_head.1} parent=1 // pred_check_branch
      %20 = sbr.rel (0) target = $region9
    $region8: #{roi_attention_box_head.1} parent=1 // pred_region
      _
    $region9: #{roi_attention_box_head.1} parent=1 // pred_fallthru
      _
    // Predicated region
    $region10: #{roi_attention_box_head.1} parent=1 // pred_check
      _
    $region11: #{roi_attention_box_head.1} parent=1 // pred_check_branch
      %22 = sbr.rel (0) target = $region13
    $region12: #{roi_attention_box_head.1} parent=1 // pred_region
      _
    $region13: #{roi_attention_box_head.1} parent=1 // pred_fallthru
      _
    // Predicated region
    $region14: #{roi_attention_box_head.1} parent=1 // pred_check
      _
    $region15: #{roi_attention_box_head.1} parent=1 // pred_check_branch
      %24 = sbr.rel (0) target = $region17
    $region16: #{roi_attention_box_head.1} parent=1 // pred_region
      _
    $region17: #{roi_attention_box_head.1} parent=1 // pred_fallthru
      _
    // Predicated region
    $region18: #{roi_attention_box_head.1} parent=1 // pred_check
      _
    $region19: #{roi_attention_box_head.1} parent=1 // pred_check_branch
      %26 = sbr.rel (0) target = $region21
    $region20: #{roi_attention_box_head.1} parent=1 // pred_region
      _
    $region21: #{roi_attention_box_head.1} parent=1 // pred_fallthru
      _
    // Predicated region
    $region22: #{roi_attention_box_head.1} parent=1 // pred_check
      _
    $region23: #{roi_attention_box_head.1} parent=1 // pred_check_branch
      %28 = sbr.rel (0) target = $region25
    $region24: #{roi_attention_box_head.1} parent=1 // pred_region
      _
    $region25: #{roi_attention_box_head.1} parent=1 // pred_fallthru
      _
    // Predicated region
    $region26: #{roi_attention_box_head.1} parent=1 // pred_check
      _
    $region27: #{roi_attention_box_head.1} parent=1 // pred_check_branch
      %30 = sbr.rel (0) target = $region29
    $region28: #{roi_attention_box_head.1} parent=1 // pred_region
      _
    $region29: #{roi_attention_box_head.1} parent=1 // pred_fallthru
      _
    // Predicated region
    $region30: #{roi_attention_box_head.1} parent=1 // pred_check
      _
    $region31: #{roi_attention_box_head.1} parent=1 // pred_check_branch
      %32 = sbr.rel (0) target = $region33
    $region32: #{roi_attention_box_head.1} parent=1 // pred_region
      _
    $region33: #{roi_attention_box_head.1} parent=1 // pred_fallthru
      _
    // Predicated region
    $region34: #{roi_attention_box_head.1} parent=1 // pred_check
      _
    $region35: #{roi_attention_box_head.1} parent=1 // pred_check_branch
      %34 = sbr.rel (0) target = $region37
    $region36: #{roi_attention_box_head.1} parent=1 // pred_region
      _
    $region37: #{roi_attention_box_head.1} parent=1 // pred_fallthru
      _
    %v36 = vld [vmem:[%s0] sm:$0xff]
    %v37 = vld [vmem:[%s0 + $0x8] sm:$0xff]
    %v38 = vld [vmem:[%s0 + $0x10] sm:$0xff]
    %v39 = vld [vmem:[%s0 + $0x18] sm:$0xff]
    %v40 = vld [vmem:[%s0 + $0x20] sm:$0xff]
    %v41 = vld [vmem:[%s0 + $0x28] sm:$0xff]
    %v42 = vld [vmem:[%s0 + $0x30] sm:$0xff]
    %v43 = vld [vmem:[%s0 + $0x38] sm:$0xff]
    %v44 = vld [vmem:[%s1] sm:$0xf]
    %v45 = vld [vmem:[%s1 + $0x4] sm:$0xf]
    %v46 = vld [vmem:[%s1 + $0x8] sm:$0xf]
    %v47 = vld [vmem:[%s1 + $0xc] sm:$0xf]
    %v48 = vld [vmem:[%s1 + $0x10] sm:$0xf]
    %v49 = vld [vmem:[%s1 + $0x14] sm:$0xf]
    %v50 = vld [vmem:[%s1 + $0x18] sm:$0xf]
    %v51 = vld [vmem:[%s1 + $0x1c] sm:$0xf]
    %v52 = vld [vmem:[%s1 + $0x20] sm:$0xf]
    %v53 = vld [vmem:[%s1 + $0x24] sm:$0xf]
    %v54 = vld [vmem:[%s1 + $0x28] sm:$0xf]
    %v55 = vld [vmem:[%s1 + $0x2c] sm:$0xf]
    %v56 = vld [vmem:[%s1 + $0x30] sm:$0xf]
    %v57 = vld [vmem:[%s1 + $0x34] sm:$0xf]
    %v58 = vld [vmem:[%s1 + $0x38] sm:$0xf]
    %v59 = vld [vmem:[%s1 + $0x3c] sm:$0xf]
    %v60 = vld [vmem:[%s1 + $0x40] sm:$0xf]
    %v61 = vld [vmem:[%s1 + $0x44] sm:$0xf]
    %v62 = vld [vmem:[%s1 + $0x48] sm:$0xf]
    %v63 = vld [vmem:[%s1 + $0x4c] sm:$0xf]
    %v64 = vld [vmem:[%s1 + $0x50] sm:$0xf]
    %v65 = vld [vmem:[%s1 + $0x54] sm:$0xf]
    %v66 = vld [vmem:[%s1 + $0x58] sm:$0xf]
    %v67 = vld [vmem:[%s1 + $0x5c] sm:$0xf]
    %v68 = vld [vmem:[%s1 + $0x60] sm:$0xf]
    %v69 = vld [vmem:[%s1 + $0x64] sm:$0xf]
    %v70 = vld [vmem:[%s1 + $0x68] sm:$0xf]
    %v71 = vld [vmem:[%s1 + $0x6c] sm:$0xf]
    %v72 = vld [vmem:[%s1 + $0x70] sm:$0xf]
    %v73 = vld [vmem:[%s1 + $0x74] sm:$0xf]
    %v74 = vld [vmem:[%s1 + $0x78] sm:$0xf]
    %v75 = vld [vmem:[%s1 + $0x7c] sm:$0xf]
    %v76 = vld [vmem:[%s2] sm:$0x1]
    %v78 = vperm.slane %v76, 0
    %v88 = vunpack.c.l.b16 %v36
    %v89 = vunpack.c.h.b16 %v36
    %v90 = vunpack.c.l.b16 %v37
    %v91 = vunpack.c.h.b16 %v37
    %v92 = vunpack.c.l.b16 %v38
    %v93 = vunpack.c.h.b16 %v38
    %v94 = vunpack.c.l.b16 %v39
    %v95 = vunpack.c.h.b16 %v39
    %v96 = vunpack.c.l.b16 %v40
    %v97 = vunpack.c.h.b16 %v40
    %v98 = vunpack.c.l.b16 %v41
    %v99 = vunpack.c.h.b16 %v41
    %v100 = vunpack.c.l.b16 %v42
    %v101 = vunpack.c.h.b16 %v42
    %v102 = vunpack.c.l.b16 %v43
    %v103 = vunpack.c.h.b16 %v43
    %v104 = vpack.c.b16 %v90, %v88
    %v105 = vpack.c.b16 %v91, %v89
    %v106 = vpack.c.b16 %v94, %v92
    %v107 = vpack.c.b16 %v95, %v93
    %v108 = vpack.c.b16 %v98, %v96
    %v109 = vpack.c.b16 %v99, %v97
    %v110 = vpack.c.b16 %v102, %v100
    %v111 = vpack.c.b16 %v103, %v101
    %v152 = vunpack.c.l.b16 %v44
    %v153 = vunpack.c.l.b16 %v45
    %v154 = vunpack.c.l.b16 %v46
    %v155 = vunpack.c.l.b16 %v47
    %v156 = vunpack.c.l.b16 %v48
    %v157 = vunpack.c.l.b16 %v49
    %v158 = vunpack.c.l.b16 %v50
    %v159 = vunpack.c.l.b16 %v51
    %v160 = vunpack.c.l.b16 %v52
    %v161 = vunpack.c.l.b16 %v53
    %v162 = vunpack.c.l.b16 %v54
    %v163 = vunpack.c.l.b16 %v55
    %v164 = vunpack.c.l.b16 %v56
    %v165 = vunpack.c.l.b16 %v57
    %v166 = vunpack.c.l.b16 %v58
    %v167 = vunpack.c.l.b16 %v59
    %v168 = vunpack.c.l.b16 %v60
    %v169 = vunpack.c.l.b16 %v61
    %v170 = vunpack.c.l.b16 %v62
    %v171 = vunpack.c.l.b16 %v63
    %v172 = vunpack.c.l.b16 %v64
    %v173 = vunpack.c.l.b16 %v65
    %v174 = vunpack.c.l.b16 %v66
    %v175 = vunpack.c.l.b16 %v67
    %v176 = vunpack.c.l.b16 %v68
    %v177 = vunpack.c.l.b16 %v69
    %v178 = vunpack.c.l.b16 %v70
    %v179 = vunpack.c.l.b16 %v71
    %v180 = vunpack.c.l.b16 %v72
    %v181 = vunpack.c.l.b16 %v73
    %v182 = vunpack.c.l.b16 %v74
    %v183 = vunpack.c.l.b16 %v75
    %v184 = vpack.c.b16 %v153, %v152
    %v185 = vpack.c.b16 %v155, %v154
    %v186 = vpack.c.b16 %v157, %v156
    %v187 = vpack.c.b16 %v159, %v158
    %v188 = vpack.c.b16 %v161, %v160
    %v189 = vpack.c.b16 %v163, %v162
    %v190 = vpack.c.b16 %v165, %v164
    %v191 = vpack.c.b16 %v167, %v166
    %v192 = vpack.c.b16 %v169, %v168
    %v193 = vpack.c.b16 %v171, %v170
    %v194 = vpack.c.b16 %v173, %v172
    %v195 = vpack.c.b16 %v175, %v174
    %v196 = vpack.c.b16 %v177, %v176
    %v197 = vpack.c.b16 %v179, %v178
    %v198 = vpack.c.b16 %v181, %v180
    %v199 = vpack.c.b16 %v183, %v182
    %216 = vmatpush.bf16.msra.mxu0 %v191
    %217 = vmatpush.bf16.msra.mxu0 %v190
    %218 = vmatpush.bf16.msra.mxu0 %v189
    %219 = vmatpush.bf16.msra.mxu0 %v188
    %220 = vmatpush.bf16.msra.mxu0 %v187
    %221 = vmatpush.bf16.msra.mxu0 %v186
    %222 = vmatpush.bf16.msra.mxu0 %v185
    %223 = vmatpush.bf16.msra.mxu0 %v184
    %224 = vmatmul.bf16.gmra.mxu0 %v104
    %v225 = vpop.f32.mrf.mxu0
    %v226 = vadd.f32 %v78, %v225
    %v227 = vpop.f32.mrf.mxu0
    %v228 = vadd.f32 %v78, %v227
    %229 = vmatmul.bf16.gmra.mxu0 %v106
    %v230 = vpop.f32.mrf.mxu0
    %v231 = vadd.f32 %v78, %v230
    %v232 = vpop.f32.mrf.mxu0
    %v233 = vadd.f32 %v78, %v232
    %234 = vmatmul.bf16.gmra.mxu0 %v108
    %v235 = vpop.f32.mrf.mxu0
    %v236 = vadd.f32 %v78, %v235
    %v237 = vpop.f32.mrf.mxu0
    %v238 = vadd.f32 %v78, %v237
    %239 = vmatmul.bf16.gmra.mxu0 %v110
    %v240 = vpop.f32.mrf.mxu0
    %v241 = vadd.f32 %v78, %v240
    %v242 = vpop.f32.mrf.mxu0
    %v243 = vadd.f32 %v78, %v242
    %244 = vdwg.mxu0
    %245 = vmatpush.bf16.msra.mxu0 %v199
    %246 = vmatpush.bf16.msra.mxu0 %v198
    %247 = vmatpush.bf16.msra.mxu0 %v197
    %248 = vmatpush.bf16.msra.mxu0 %v196
    %249 = vmatpush.bf16.msra.mxu0 %v195
    %250 = vmatpush.bf16.msra.mxu0 %v194
    %251 = vmatpush.bf16.msra.mxu0 %v193
    %252 = vmatpush.bf16.msra.mxu0 %v192
    %253 = vmatmul.bf16.gmra.mxu0 %v105
    %v254 = vpop.f32.mrf.mxu0
    %v255 = vadd.f32 %v226, %v254
    %v256 = vpop.f32.mrf.mxu0
    %v257 = vadd.f32 %v228, %v256
    %258 = vmatmul.bf16.gmra.mxu0 %v107
    %v259 = vpop.f32.mrf.mxu0
    %v260 = vadd.f32 %v231, %v259
    %v261 = vpop.f32.mrf.mxu0
    %v262 = vadd.f32 %v233, %v261
    %263 = vmatmul.bf16.gmra.mxu0 %v109
    %v264 = vpop.f32.mrf.mxu0
    %v265 = vadd.f32 %v236, %v264
    %v266 = vpop.f32.mrf.mxu0
    %v267 = vadd.f32 %v238, %v266
    %268 = vmatmul.bf16.gmra.mxu0 %v111
    %v269 = vpop.f32.mrf.mxu0
    %v270 = vadd.f32 %v241, %v269
    %v271 = vpop.f32.mrf.mxu0
    %v272 = vadd.f32 %v243, %v271
    %273 = vdwg.mxu0
    %v274 = vmax.f32 %v255, 0.0
    %v275 = vmax.f32 %v257, 0.0
    %v276 = vmax.f32 %v260, 0.0
    %v277 = vmax.f32 %v262, 0.0
    %v278 = vmax.f32 %v265, 0.0
    %v279 = vmax.f32 %v267, 0.0
    %v280 = vmax.f32 %v270, 0.0
    %v281 = vmax.f32 %v272, 0.0
    %v282 = vpack.c.bf16 %v275, %v274
    %v283 = vpack.c.bf16 %v277, %v276
    %v284 = vpack.c.bf16 %v279, %v278
    %v285 = vpack.c.bf16 %v281, %v280
    %v286 = vld [vmem:[%s3] sm:$0xf]
    %v287 = vld [vmem:[%s3 + $0x4] sm:$0xf]
    %v288 = vld [vmem:[%s3 + $0x8] sm:$0xf]
    %v289 = vld [vmem:[%s3 + $0xc] sm:$0xf]
    %v290 = vld [vmem:[%s3 + $0x10] sm:$0xf]
    %v291 = vld [vmem:[%s3 + $0x14] sm:$0xf]
    %v292 = vld [vmem:[%s3 + $0x18] sm:$0xf]
    %v293 = vld [vmem:[%s3 + $0x1c] sm:$0xf]
    %v294 = vld [vmem:[%s3 + $0x20] sm:$0xf]
    %v295 = vld [vmem:[%s3 + $0x24] sm:$0xf]
    %v296 = vld [vmem:[%s3 + $0x28] sm:$0xf]
    %v297 = vld [vmem:[%s3 + $0x2c] sm:$0xf]
    %v298 = vld [vmem:[%s3 + $0x30] sm:$0xf]
    %v299 = vld [vmem:[%s3 + $0x34] sm:$0xf]
    %v300 = vld [vmem:[%s3 + $0x38] sm:$0xf]
    %v301 = vld [vmem:[%s3 + $0x3c] sm:$0xf]
    %v302 = vld [vmem:[%s4] sm:$0x1]
    %v304 = vperm.slane %v302, 0
    %v322 = vunpack.c.l.b16 %v286
    %v323 = vunpack.c.l.b16 %v287
    %v324 = vunpack.c.l.b16 %v288
    %v325 = vunpack.c.l.b16 %v289
    %v326 = vunpack.c.l.b16 %v290
    %v327 = vunpack.c.l.b16 %v291
    %v328 = vunpack.c.l.b16 %v292
    %v329 = vunpack.c.l.b16 %v293
    %v330 = vunpack.c.l.b16 %v294
    %v331 = vunpack.c.l.b16 %v295
    %v332 = vunpack.c.l.b16 %v296
    %v333 = vunpack.c.l.b16 %v297
    %v334 = vunpack.c.l.b16 %v298
    %v335 = vunpack.c.l.b16 %v299
    %v336 = vunpack.c.l.b16 %v300
    %v337 = vunpack.c.l.b16 %v301
    %v338 = vpack.c.b16 %v323, %v322
    %v339 = vpack.c.b16 %v325, %v324
    %v340 = vpack.c.b16 %v327, %v326
    %v341 = vpack.c.b16 %v329, %v328
    %v342 = vpack.c.b16 %v331, %v330
    %v343 = vpack.c.b16 %v333, %v332
    %v344 = vpack.c.b16 %v335, %v334
    %v345 = vpack.c.b16 %v337, %v336
    %354 = vmatpush.bf16.msra.mxu0 %v345
    %355 = vmatpush.bf16.msra.mxu0 %v344
    %356 = vmatpush.bf16.msra.mxu0 %v343
    %357 = vmatpush.bf16.msra.mxu0 %v342
    %358 = vmatpush.bf16.msra.mxu0 %v341
    %359 = vmatpush.bf16.msra.mxu0 %v340
    %360 = vmatpush.bf16.msra.mxu0 %v339
    %361 = vmatpush.bf16.msra.mxu0 %v338
    %362 = vmatmul.bf16.gmra.mxu0 %v282
    %v363 = vpop.f32.mrf.mxu0
    %v364 = vadd.f32 %v304, %v363
    %v365 = vpop.f32.mrf.mxu0
    %v366 = vadd.f32 %v304, %v365
    %367 = vmatmul.bf16.gmra.mxu0 %v283
    %v368 = vpop.f32.mrf.mxu0
    %v369 = vadd.f32 %v304, %v368
    %v370 = vpop.f32.mrf.mxu0
    %v371 = vadd.f32 %v304, %v370
    %372 = vmatmul.bf16.gmra.mxu0 %v284
    %v373 = vpop.f32.mrf.mxu0
    %v374 = vadd.f32 %v304, %v373
    %v375 = vpop.f32.mrf.mxu0
    %v376 = vadd.f32 %v304, %v375
    %377 = vmatmul.bf16.gmra.mxu0 %v285
    %v378 = vpop.f32.mrf.mxu0
    %v379 = vadd.f32 %v304, %v378
    %v380 = vpop.f32.mrf.mxu0
    %v381 = vadd.f32 %v304, %v380
    %382 = vdwg.mxu0
    %v383 = vmax.f32 %v364, 0.0
    %v384 = vmax.f32 %v366, 0.0
    %v385 = vmax.f32 %v369, 0.0
    %v386 = vmax.f32 %v371, 0.0
    %v387 = vmax.f32 %v374, 0.0
    %v388 = vmax.f32 %v376, 0.0
    %v389 = vmax.f32 %v379, 0.0
    %v390 = vmax.f32 %v381, 0.0
    %v391 = vpack.c.bf16 %v384, %v383
    %v392 = vpack.c.bf16 %v386, %v385
    %v393 = vpack.c.bf16 %v388, %v387
    %v394 = vpack.c.bf16 %v390, %v389
    %v395 = vld [vmem:[%s5] sm:$0xff]
    %v396 = vld [vmem:[%s5 + $0x8] sm:$0xf]
    %v397 = vld [vmem:[%s5 + $0xc] sm:$0xff]
    %v398 = vld [vmem:[%s5 + $0x14] sm:$0xf]
    %v399 = vld [vmem:[%s5 + $0x18] sm:$0xff]
    %v400 = vld [vmem:[%s5 + $0x20] sm:$0xf]
    %v401 = vld [vmem:[%s5 + $0x24] sm:$0xff]
    %v402 = vld [vmem:[%s5 + $0x2c] sm:$0xf]
    %v403 = vld [vmem:[%s5 + $0x30] sm:$0xff]
    %v404 = vld [vmem:[%s5 + $0x38] sm:$0xf]
    %v405 = vld [vmem:[%s5 + $0x3c] sm:$0xff]
    %v406 = vld [vmem:[%s5 + $0x44] sm:$0xf]
    %v407 = vld [vmem:[%s5 + $0x48] sm:$0xff]
    %v408 = vld [vmem:[%s5 + $0x50] sm:$0xf]
    %v409 = vld [vmem:[%s5 + $0x54] sm:$0xff]
    %v410 = vld [vmem:[%s5 + $0x5c] sm:$0xf]
    %v411 = vld [vmem:[%s5 + $0x60] sm:$0xff]
    %v412 = vld [vmem:[%s5 + $0x68] sm:$0xf]
    %v413 = vld [vmem:[%s5 + $0x6c] sm:$0xff]
    %v414 = vld [vmem:[%s5 + $0x74] sm:$0xf]
    %v415 = vld [vmem:[%s5 + $0x78] sm:$0xff]
    %v416 = vld [vmem:[%s5 + $0x80] sm:$0xf]
    %v417 = vld [vmem:[%s5 + $0x84] sm:$0xff]
    %v418 = vld [vmem:[%s5 + $0x8c] sm:$0xf]
    %v419 = vld [vmem:[%s5 + $0x90] sm:$0xff]
    %v420 = vld [vmem:[%s5 + $0x98] sm:$0xf]
    %v421 = vld [vmem:[%s5 + $0x9c] sm:$0xff]
    %v422 = vld [vmem:[%s5 + $0xa4] sm:$0xf]
    %v423 = vld [vmem:[%s5 + $0xa8] sm:$0xff]
    %v424 = vld [vmem:[%s5 + $0xb0] sm:$0xf]
    %v425 = vld [vmem:[%s5 + $0xb4] sm:$0xff]
    %v426 = vld [vmem:[%s5 + $0xbc] sm:$0xf]
    %v459 = vunpack.c.l.b16 %v395
    %v460 = vunpack.c.h.b16 %v395
    %v461 = vunpack.c.l.b16 %v396
    %v462 = vunpack.c.l.b16 %v397
    %v463 = vunpack.c.h.b16 %v397
    %v464 = vunpack.c.l.b16 %v398
    %v465 = vunpack.c.l.b16 %v399
    %v466 = vunpack.c.h.b16 %v399
    %v467 = vunpack.c.l.b16 %v400
    %v468 = vunpack.c.l.b16 %v401
    %v469 = vunpack.c.h.b16 %v401
    %v470 = vunpack.c.l.b16 %v402
    %v471 = vunpack.c.l.b16 %v403
    %v472 = vunpack.c.h.b16 %v403
    %v473 = vunpack.c.l.b16 %v404
    %v474 = vunpack.c.l.b16 %v405
    %v475 = vunpack.c.h.b16 %v405
    %v476 = vunpack.c.l.b16 %v406
    %v477 = vunpack.c.l.b16 %v407
    %v478 = vunpack.c.h.b16 %v407
    %v479 = vunpack.c.l.b16 %v408
    %v480 = vunpack.c.l.b16 %v409
    %v481 = vunpack.c.h.b16 %v409
    %v482 = vunpack.c.l.b16 %v410
    %v483 = vunpack.c.l.b16 %v411
    %v484 = vunpack.c.h.b16 %v411
    %v485 = vunpack.c.l.b16 %v412
    %v486 = vunpack.c.l.b16 %v413
    %v487 = vunpack.c.h.b16 %v413
    %v488 = vunpack.c.l.b16 %v414
    %v489 = vunpack.c.l.b16 %v415
    %v490 = vunpack.c.h.b16 %v415
    %v491 = vunpack.c.l.b16 %v416
    %v492 = vunpack.c.l.b16 %v417
    %v493 = vunpack.c.h.b16 %v417
    %v494 = vunpack.c.l.b16 %v418
    %v495 = vunpack.c.l.b16 %v419
    %v496 = vunpack.c.h.b16 %v419
    %v497 = vunpack.c.l.b16 %v420
    %v498 = vunpack.c.l.b16 %v421
    %v499 = vunpack.c.h.b16 %v421
    %v500 = vunpack.c.l.b16 %v422
    %v501 = vunpack.c.l.b16 %v423
    %v502 = vunpack.c.h.b16 %v423
    %v503 = vunpack.c.l.b16 %v424
    %v504 = vunpack.c.l.b16 %v425
    %v505 = vunpack.c.h.b16 %v425
    %v506 = vunpack.c.l.b16 %v426
    %v507 = vpack.c.b16 %v462, %v459
    %v508 = vpack.c.b16 %v463, %v460
    %v509 = vpack.c.b16 %v464, %v461
    %v510 = vpack.c.b16 %v468, %v465
    %v511 = vpack.c.b16 %v469, %v466
    %v512 = vpack.c.b16 %v470, %v467
    %v513 = vpack.c.b16 %v474, %v471
    %v514 = vpack.c.b16 %v475, %v472
    %v515 = vpack.c.b16 %v476, %v473
    %v516 = vpack.c.b16 %v480, %v477
    %v517 = vpack.c.b16 %v481, %v478
    %v518 = vpack.c.b16 %v482, %v479
    %v519 = vpack.c.b16 %v486, %v483
    %v520 = vpack.c.b16 %v487, %v484
    %v521 = vpack.c.b16 %v488, %v485
    %v522 = vpack.c.b16 %v492, %v489
    %v523 = vpack.c.b16 %v493, %v490
    %v524 = vpack.c.b16 %v494, %v491
    %v525 = vpack.c.b16 %v498, %v495
    %v526 = vpack.c.b16 %v499, %v496
    %v527 = vpack.c.b16 %v500, %v497
    %v528 = vpack.c.b16 %v504, %v501
    %v529 = vpack.c.b16 %v505, %v502
    %v530 = vpack.c.b16 %v506, %v503
    %555 = vmatpush.bf16.msra.mxu0 %v528
    %556 = vmatpush.bf16.msra.mxu0 %v525
    %557 = vmatpush.bf16.msra.mxu0 %v522
    %558 = vmatpush.bf16.msra.mxu0 %v519
    %559 = vmatpush.bf16.msra.mxu0 %v516
    %560 = vmatpush.bf16.msra.mxu0 %v513
    %561 = vmatpush.bf16.msra.mxu0 %v510
    %562 = vmatpush.bf16.msra.mxu0 %v507
    %563 = vmatmul.bf16.gmra.mxu0 %v391
    %v564 = vpop.f32.mrf.mxu0
    %v565 = vadd.f32 0.0, %v564
    %v566 = vpop.f32.mrf.mxu0
    %v567 = vadd.f32 0.0, %v566
    %568 = vmatmul.bf16.gmra.mxu0 %v392
    %v569 = vpop.f32.mrf.mxu0
    %v570 = vadd.f32 0.0, %v569
    %v571 = vpop.f32.mrf.mxu0
    %v572 = vadd.f32 0.0, %v571
    %573 = vmatmul.bf16.gmra.mxu0 %v393
    %v574 = vpop.f32.mrf.mxu0
    %v575 = vadd.f32 0.0, %v574
    %v576 = vpop.f32.mrf.mxu0
    %v577 = vadd.f32 0.0, %v576
    %578 = vmatmul.bf16.gmra.mxu0 %v394
    %v579 = vpop.f32.mrf.mxu0
    %v580 = vadd.f32 0.0, %v579
    %v581 = vpop.f32.mrf.mxu0
    %v582 = vadd.f32 0.0, %v581
    %583 = vdwg.mxu0
    %584 = vmatpush.bf16.msra.mxu0 %v529
    %585 = vmatpush.bf16.msra.mxu0 %v526
    %586 = vmatpush.bf16.msra.mxu0 %v523
    %587 = vmatpush.bf16.msra.mxu0 %v520
    %588 = vmatpush.bf16.msra.mxu0 %v517
    %589 = vmatpush.bf16.msra.mxu0 %v514
    %590 = vmatpush.bf16.msra.mxu0 %v511
    %591 = vmatpush.bf16.msra.mxu0 %v508
    %592 = vmatmul.bf16.gmra.mxu0 %v391
    %v593 = vpop.f32.mrf.mxu0
    %v594 = vadd.f32 0.0, %v593
    %v595 = vpop.f32.mrf.mxu0
    %v596 = vadd.f32 0.0, %v595
    %597 = vmatmul.bf16.gmra.mxu0 %v392
    %v598 = vpop.f32.mrf.mxu0
    %v599 = vadd.f32 0.0, %v598
    %v600 = vpop.f32.mrf.mxu0
    %v601 = vadd.f32 0.0, %v600
    %602 = vmatmul.bf16.gmra.mxu0 %v393
    %v603 = vpop.f32.mrf.mxu0
    %v604 = vadd.f32 0.0, %v603
    %v605 = vpop.f32.mrf.mxu0
    %v606 = vadd.f32 0.0, %v605
    %607 = vmatmul.bf16.gmra.mxu0 %v394
    %v608 = vpop.f32.mrf.mxu0
    %v609 = vadd.f32 0.0, %v608
    %v610 = vpop.f32.mrf.mxu0
    %v611 = vadd.f32 0.0, %v610
    %612 = vdwg.mxu0
    %613 = vmatpush.bf16.msra.mxu0 %v530
    %614 = vmatpush.bf16.msra.mxu0 %v527
    %615 = vmatpush.bf16.msra.mxu0 %v524
    %616 = vmatpush.bf16.msra.mxu0 %v521
    %617 = vmatpush.bf16.msra.mxu0 %v518
    %618 = vmatpush.bf16.msra.mxu0 %v515
    %619 = vmatpush.bf16.msra.mxu0 %v512
    %620 = vmatpush.bf16.msra.mxu0 %v509
    %621 = vmatmul.bf16.gmra.mxu0 %v391
    %v622 = vpop.f32.mrf.mxu0
    %v623 = vadd.f32 0.0, %v622
    %v624 = vpop.f32.mrf.mxu0
    %v625 = vadd.f32 0.0, %v624
    %626 = vmatmul.bf16.gmra.mxu0 %v392
    %v627 = vpop.f32.mrf.mxu0
    %v628 = vadd.f32 0.0, %v627
    %v629 = vpop.f32.mrf.mxu0
    %v630 = vadd.f32 0.0, %v629
    %631 = vmatmul.bf16.gmra.mxu0 %v393
    %v632 = vpop.f32.mrf.mxu0
    %v633 = vadd.f32 0.0, %v632
    %v634 = vpop.f32.mrf.mxu0
    %v635 = vadd.f32 0.0, %v634
    %636 = vmatmul.bf16.gmra.mxu0 %v394
    %v637 = vpop.f32.mrf.mxu0
    %v638 = vadd.f32 0.0, %v637
    %v639 = vpop.f32.mrf.mxu0
    %v640 = vadd.f32 0.0, %v639
    %641 = vdwg.mxu0
    %v642 = vpack.c.bf16 %v594, %v565
    %v643 = vpack.c.bf16 %v623, %v623
    %v644 = vpack.c.bf16 %v596, %v567
    %v645 = vpack.c.bf16 %v625, %v625
    %v646 = vpack.c.bf16 %v599, %v570
    %v647 = vpack.c.bf16 %v628, %v628
    %v648 = vpack.c.bf16 %v601, %v572
    %v649 = vpack.c.bf16 %v630, %v630
    %v650 = vpack.c.bf16 %v604, %v575
    %v651 = vpack.c.bf16 %v633, %v633
    %v652 = vpack.c.bf16 %v606, %v577
    %v653 = vpack.c.bf16 %v635, %v635
    %v654 = vpack.c.bf16 %v609, %v580
    %v655 = vpack.c.bf16 %v638, %v638
    %v656 = vpack.c.bf16 %v611, %v582
    %v657 = vpack.c.bf16 %v640, %v640
    %v660 = vunpack.c.l.b16 %v642
    %v661 = vunpack.c.l.b16 %v644
    %v662 = vpack.c.b16 %v661, %v660
    %v669 = vunpack.c.h.b16 %v642
    %v670 = vunpack.c.h.b16 %v644
    %v671 = vunpack.c.h.b16 %v646
    %v672 = vunpack.c.h.b16 %v648
    %v673 = vunpack.c.h.b16 %v650
    %v674 = vunpack.c.h.b16 %v652
    %v675 = vunpack.c.h.b16 %v654
    %v676 = vunpack.c.h.b16 %v656
    %v677 = vpack.c.b16 %v670, %v669
    %v678 = vpack.c.b16 %v672, %v671
    %v679 = vpack.c.b16 %v674, %v673
    %v680 = vpack.c.b16 %v676, %v675
    %vm681 = vcmask 261120
    %v683 = vsel %vm681, %v662, 0
    %v686 = vsel %vm681, %v677, 0
    %v689 = vsel %vm681, %v678, 0
    %v692 = vsel %vm681, %v679, 0
    %v695 = vsel %vm681, %v680, 0
    %697 = vmatpush.bf16.xpose.msra.mxu0 0
    %698 = vmatpush.bf16.xpose.msra.mxu0 0
    %699 = vmatpush.bf16.xpose.msra.mxu0 0
    %700 = vmatpush.bf16.xpose.msra.mxu0 0
    %701 = vmatpush.bf16.xpose.msra.mxu0 %v695
    %702 = vmatpush.bf16.xpose.msra.mxu0 %v692
    %703 = vmatpush.bf16.xpose.msra.mxu0 %v689
    %704 = vmatpush.bf16.xpose.msra.mxu0 %v686
    %705 = vmatmul.bf16.gmra.mxu0 %v683
    %v706 = vpop.f32.mrf.mxu0
    %v707 = vadd.f32 0.0, %v706
    %v708 = vpop.f32.mrf.mxu0
    %v709 = vadd.f32 0.0, %v708
    %710 = vdwg.mxu0
    %v711 = vmul.f32 %v707, 0.17677669
    %v712 = vmul.f32 %v709, 0.17677669
    %vm713 = vcmask 523264
    %v714 = vsel %vm713, %v711, -inf
    %715 = vmax.xlane.f32.xlu0 %v714
    %v716 = vpop.xlane.xlu0 %715
    %v717 = vsel %vm713, %v712, -inf
    %718 = vmax.xlane.f32.xlu0 %v717
    %v719 = vpop.xlane.xlu0 %718
    %v720 = vsub.f32 %v711, %v716
    %v721 = vsub.f32 %v712, %v719
    %v722 = vmul.f32 %v720, 1.442695
    %v723 = vpow.pop %v722
    %v724 = vmul.f32 %v721, 1.442695
    %v725 = vpow.pop %v724
    %v726 = vsel %vm713, %v723, 0.0
    %727 = vadd.xlane.f32.xlu0 %v726
    %v728 = vpop.xlane.xlu0 %727
    %v729 = vsel %vm713, %v725, 0.0
    %730 = vadd.xlane.f32.xlu0 %v729
    %v731 = vpop.xlane.xlu0 %730
    %v732 = vrcp.pop %v728
    %v733 = vrcp.pop %v731
    %v734 = vmul.f32 %v723, %v732
    %v735 = vmul.f32 %v725, %v733
    %v736 = vpack.c.bf16 %v735, %v734
    %v745 = vunpack.c.l.b16 %v643
    %v746 = vunpack.c.l.b16 %v645
    %v747 = vunpack.c.l.b16 %v647
    %v748 = vunpack.c.l.b16 %v649
    %v749 = vunpack.c.l.b16 %v651
    %v750 = vunpack.c.l.b16 %v653
    %v751 = vunpack.c.l.b16 %v655
    %v752 = vunpack.c.l.b16 %v657
    %v753 = vpack.c.b16 %v746, %v745
    %v754 = vpack.c.b16 %v748, %v747
    %v755 = vpack.c.b16 %v750, %v749
    %v756 = vpack.c.b16 %v752, %v751
    %v762 = vsel %vm713, %v736, 0
    %764 = vmatpush.bf16.msra.mxu0 0
    %765 = vmatpush.bf16.msra.mxu0 0
    %766 = vmatpush.bf16.msra.mxu0 0
    %767 = vmatpush.bf16.msra.mxu0 0
    %768 = vmatpush.bf16.msra.mxu0 %v756
    %769 = vmatpush.bf16.msra.mxu0 %v755
    %770 = vmatpush.bf16.msra.mxu0 %v754
    %771 = vmatpush.bf16.msra.mxu0 %v753
    %772 = vmatmul.bf16.gmra.mxu0 %v762
    %v773 = vpop.f32.mrf.mxu0
    %v774 = vadd.f32 0.0, %v773
    %v775 = vpop.f32.mrf.mxu0
    %v776 = vadd.f32 0.0, %v775
    %777 = vdwg.mxu0
    %v778 = vpack.c.bf16 %v776, %v774
    %v779 = vld [vmem:[%s6] sm:$0xf]
    %v780 = vld [vmem:[%s6 + $0x4] sm:$0xf]
    %v781 = vld [vmem:[%s6 + $0x8] sm:$0xf]
    %v782 = vld [vmem:[%s6 + $0xc] sm:$0xf]
    %783 = vrot.lane.b32.xlu0 %v662, 96
    %v784 = vpop.permute.xlu0 %783
    %785 = vrot.lane.b32.xlu0 %v677, 96
    %v786 = vpop.permute.xlu0 %785
    %787 = vrot.lane.b32.xlu0 %v678, 96
    %v788 = vpop.permute.xlu0 %787
    %789 = vrot.lane.b32.xlu0 %v679, 96
    %v790 = vpop.permute.xlu0 %789
    %791 = vrot.lane.b32.xlu0 %v680, 96
    %v792 = vpop.permute.xlu0 %791
    %v794 = vsel %vm681, %v784, 0
    %v797 = vsel %vm681, %v786, 0
    %v800 = vsel %vm681, %v788, 0
    %v803 = vsel %vm681, %v790, 0
    %v806 = vsel %vm681, %v792, 0
    %808 = vmatpush.bf16.xpose.msra.mxu0 0
    %809 = vmatpush.bf16.xpose.msra.mxu0 0
    %810 = vmatpush.bf16.xpose.msra.mxu0 0
    %811 = vmatpush.bf16.xpose.msra.mxu0 0
    %812 = vmatpush.bf16.xpose.msra.mxu0 %v806
    %813 = vmatpush.bf16.xpose.msra.mxu0 %v803
    %814 = vmatpush.bf16.xpose.msra.mxu0 %v800
    %815 = vmatpush.bf16.xpose.msra.mxu0 %v797
    %816 = vmatmul.bf16.gmra.mxu0 %v794
    %v817 = vpop.f32.mrf.mxu0
    %v818 = vadd.f32 0.0, %v817
    %v819 = vpop.f32.mrf.mxu0
    %v820 = vadd.f32 0.0, %v819
    %821 = vdwg.mxu0
    %v822 = vmul.f32 %v818, 0.17677669
    %v823 = vmul.f32 %v820, 0.17677669
    %v824 = vsel %vm713, %v822, -inf
    %825 = vmax.xlane.f32.xlu0 %v824
    %v826 = vpop.xlane.xlu0 %825
    %v827 = vsel %vm713, %v823, -inf
    %828 = vmax.xlane.f32.xlu0 %v827
    %v829 = vpop.xlane.xlu0 %828
    %v830 = vsub.f32 %v822, %v826
    %v831 = vsub.f32 %v823, %v829
    %v832 = vmul.f32 %v830, 1.442695
    %v833 = vpow.pop %v832
    %v834 = vmul.f32 %v831, 1.442695
    %v835 = vpow.pop %v834
    %v836 = vsel %vm713, %v833, 0.0
    %837 = vadd.xlane.f32.xlu0 %v836
    %v838 = vpop.xlane.xlu0 %837
    %v839 = vsel %vm713, %v835, 0.0
    %840 = vadd.xlane.f32.xlu0 %v839
    %v841 = vpop.xlane.xlu0 %840
    %v842 = vrcp.pop %v838
    %v843 = vrcp.pop %v841
    %v844 = vmul.f32 %v833, %v842
    %v845 = vmul.f32 %v835, %v843
    %v846 = vpack.c.bf16 %v845, %v844
    %847 = vrot.lane.b32.xlu0 %v753, 96
    %v848 = vpop.permute.xlu0 %847
    %849 = vrot.lane.b32.xlu0 %v754, 96
    %v850 = vpop.permute.xlu0 %849
    %851 = vrot.lane.b32.xlu0 %v755, 96
    %v852 = vpop.permute.xlu0 %851
    %853 = vrot.lane.b32.xlu0 %v756, 96
    %v854 = vpop.permute.xlu0 %853
    %v860 = vsel %vm713, %v846, 0
    %862 = vmatpush.bf16.msra.mxu0 0
    %863 = vmatpush.bf16.msra.mxu0 0
    %864 = vmatpush.bf16.msra.mxu0 0
    %865 = vmatpush.bf16.msra.mxu0 0
    %866 = vmatpush.bf16.msra.mxu0 %v854
    %867 = vmatpush.bf16.msra.mxu0 %v852
    %868 = vmatpush.bf16.msra.mxu0 %v850
    %869 = vmatpush.bf16.msra.mxu0 %v848
    %870 = vmatmul.bf16.gmra.mxu0 %v860
    %v871 = vpop.f32.mrf.mxu0
    %v872 = vadd.f32 0.0, %v871
    %v873 = vpop.f32.mrf.mxu0
    %v874 = vadd.f32 0.0, %v873
    %875 = vdwg.mxu0
    %v876 = vpack.c.bf16 %v874, %v872
    %s877 = scalar_lea.vmem %s6, 16
    %v878 = vld [vmem:[%s877] sm:$0xf]
    %v879 = vld [vmem:[%s877 + $0x4] sm:$0xf]
    %v880 = vld [vmem:[%s877 + $0x8] sm:$0xf]
    %v881 = vld [vmem:[%s877 + $0xc] sm:$0xf]
    %v886 = vunpack.c.l.b16 %v878
    %v887 = vunpack.c.l.b16 %v879
    %v888 = vunpack.c.l.b16 %v880
    %v889 = vunpack.c.l.b16 %v881
    %v890 = vpack.c.b16 %v887, %v886
    %v891 = vpack.c.b16 %v889, %v888
    %v895 = vsel %vm681, %v876, 0
    %897 = vmatpush.bf16.msra.mxu0 0
    %898 = vmatpush.bf16.msra.mxu0 0
    %899 = vmatpush.bf16.msra.mxu0 0
    %900 = vmatpush.bf16.msra.mxu0 0
    %901 = vmatpush.bf16.msra.mxu0 0
    %902 = vmatpush.bf16.msra.mxu0 0
    %903 = vmatpush.bf16.msra.mxu0 %v891
    %904 = vmatpush.bf16.msra.mxu0 %v890
    %905 = vmatmul.bf16.gmra.mxu0 %v895
    %v906 = vpop.f32.mrf.mxu0
    %v907 = vadd.f32 0.0, %v906
    %v908 = vpop.f32.mrf.mxu0
    %v909 = vadd.f32 0.0, %v908
    %910 = vdwg.mxu0
    %v915 = vunpack.c.l.b16 %v779
    %v916 = vunpack.c.l.b16 %v780
    %v917 = vunpack.c.l.b16 %v781
    %v918 = vunpack.c.l.b16 %v782
    %v919 = vpack.c.b16 %v916, %v915
    %v920 = vpack.c.b16 %v918, %v917
    %v924 = vsel %vm681, %v778, 0
    %926 = vmatpush.bf16.msra.mxu0 0
    %927 = vmatpush.bf16.msra.mxu0 0
    %928 = vmatpush.bf16.msra.mxu0 0
    %929 = vmatpush.bf16.msra.mxu0 0
    %930 = vmatpush.bf16.msra.mxu0 0
    %931 = vmatpush.bf16.msra.mxu0 0
    %932 = vmatpush.bf16.msra.mxu0 %v920
    %933 = vmatpush.bf16.msra.mxu0 %v919
    %934 = vmatmul.bf16.gmra.mxu0 %v924
    %v935 = vpop.f32.mrf.mxu0
    %v936 = vadd.f32 %v907, %v935
    %v937 = vpop.f32.mrf.mxu0
    %v938 = vadd.f32 %v909, %v937
    %939 = vdwg.mxu0
    %940 = vrot.lane.b32.xlu0 %v662, 64
    %v941 = vpop.permute.xlu0 %940
    %942 = vrot.lane.b32.xlu0 %v677, 64
    %v943 = vpop.permute.xlu0 %942
    %944 = vrot.lane.b32.xlu0 %v678, 64
    %v945 = vpop.permute.xlu0 %944
    %946 = vrot.lane.b32.xlu0 %v679, 64
    %v947 = vpop.permute.xlu0 %946
    %948 = vrot.lane.b32.xlu0 %v680, 64
    %v949 = vpop.permute.xlu0 %948
    %v951 = vsel %vm681, %v941, 0
    %v954 = vsel %vm681, %v943, 0
    %v957 = vsel %vm681, %v945, 0
    %v960 = vsel %vm681, %v947, 0
    %v963 = vsel %vm681, %v949, 0
    %965 = vmatpush.bf16.xpose.msra.mxu0 0
    %966 = vmatpush.bf16.xpose.msra.mxu0 0
    %967 = vmatpush.bf16.xpose.msra.mxu0 0
    %968 = vmatpush.bf16.xpose.msra.mxu0 0
    %969 = vmatpush.bf16.xpose.msra.mxu0 %v963
    %970 = vmatpush.bf16.xpose.msra.mxu0 %v960
    %971 = vmatpush.bf16.xpose.msra.mxu0 %v957
    %972 = vmatpush.bf16.xpose.msra.mxu0 %v954
    %973 = vmatmul.bf16.gmra.mxu0 %v951
    %v974 = vpop.f32.mrf.mxu0
    %v975 = vadd.f32 0.0, %v974
    %v976 = vpop.f32.mrf.mxu0
    %v977 = vadd.f32 0.0, %v976
    %978 = vdwg.mxu0
    %v979 = vmul.f32 %v975, 0.17677669
    %v980 = vmul.f32 %v977, 0.17677669
    %v981 = vsel %vm713, %v979, -inf
    %982 = vmax.xlane.f32.xlu0 %v981
    %v983 = vpop.xlane.xlu0 %982
    %v984 = vsel %vm713, %v980, -inf
    %985 = vmax.xlane.f32.xlu0 %v984
    %v986 = vpop.xlane.xlu0 %985
    %v987 = vsub.f32 %v979, %v983
    %v988 = vsub.f32 %v980, %v986
    %v989 = vmul.f32 %v987, 1.442695
    %v990 = vpow.pop %v989
    %v991 = vmul.f32 %v988, 1.442695
    %v992 = vpow.pop %v991
    %v993 = vsel %vm713, %v990, 0.0
    %994 = vadd.xlane.f32.xlu0 %v993
    %v995 = vpop.xlane.xlu0 %994
    %v996 = vsel %vm713, %v992, 0.0
    %997 = vadd.xlane.f32.xlu0 %v996
    %v998 = vpop.xlane.xlu0 %997
    %v999 = vrcp.pop %v995
    %v1000 = vrcp.pop %v998
    %v1001 = vmul.f32 %v990, %v999
    %v1002 = vmul.f32 %v992, %v1000
    %v1003 = vpack.c.bf16 %v1002, %v1001
    %1004 = vrot.lane.b32.xlu0 %v753, 64
    %v1005 = vpop.permute.xlu0 %1004
    %1006 = vrot.lane.b32.xlu0 %v754, 64
    %v1007 = vpop.permute.xlu0 %1006
    %1008 = vrot.lane.b32.xlu0 %v755, 64
    %v1009 = vpop.permute.xlu0 %1008
    %1010 = vrot.lane.b32.xlu0 %v756, 64
    %v1011 = vpop.permute.xlu0 %1010
    %v1017 = vsel %vm713, %v1003, 0
    %1019 = vmatpush.bf16.msra.mxu0 0
    %1020 = vmatpush.bf16.msra.mxu0 0
    %1021 = vmatpush.bf16.msra.mxu0 0
    %1022 = vmatpush.bf16.msra.mxu0 0
    %1023 = vmatpush.bf16.msra.mxu0 %v1011
    %1024 = vmatpush.bf16.msra.mxu0 %v1009
    %1025 = vmatpush.bf16.msra.mxu0 %v1007
    %1026 = vmatpush.bf16.msra.mxu0 %v1005
    %1027 = vmatmul.bf16.gmra.mxu0 %v1017
    %v1028 = vpop.f32.mrf.mxu0
    %v1029 = vadd.f32 0.0, %v1028
    %v1030 = vpop.f32.mrf.mxu0
    %v1031 = vadd.f32 0.0, %v1030
    %1032 = vdwg.mxu0
    %v1033 = vpack.c.bf16 %v1031, %v1029
    %s1034 = scalar_lea.vmem %s6, 32
    %v1035 = vld [vmem:[%s1034] sm:$0xf]
    %v1036 = vld [vmem:[%s1034 + $0x4] sm:$0xf]
    %v1037 = vld [vmem:[%s1034 + $0x8] sm:$0xf]
    %v1038 = vld [vmem:[%s1034 + $0xc] sm:$0xf]
    %v1043 = vunpack.c.l.b16 %v1035
    %v1044 = vunpack.c.l.b16 %v1036
    %v1045 = vunpack.c.l.b16 %v1037
    %v1046 = vunpack.c.l.b16 %v1038
    %v1047 = vpack.c.b16 %v1044, %v1043
    %v1048 = vpack.c.b16 %v1046, %v1045
    %v1052 = vsel %vm681, %v1033, 0
    %1054 = vmatpush.bf16.msra.mxu0 0
    %1055 = vmatpush.bf16.msra.mxu0 0
    %1056 = vmatpush.bf16.msra.mxu0 0
    %1057 = vmatpush.bf16.msra.mxu0 0
    %1058 = vmatpush.bf16.msra.mxu0 0
    %1059 = vmatpush.bf16.msra.mxu0 0
    %1060 = vmatpush.bf16.msra.mxu0 %v1048
    %1061 = vmatpush.bf16.msra.mxu0 %v1047
    %1062 = vmatmul.bf16.gmra.mxu0 %v1052
    %v1063 = vpop.f32.mrf.mxu0
    %v1064 = vadd.f32 0.0, %v1063
    %v1065 = vpop.f32.mrf.mxu0
    %v1066 = vadd.f32 0.0, %v1065
    %1067 = vdwg.mxu0
    %v1068 = vadd.f32 %v936, %v1064
    %v1069 = vadd.f32 %v938, %v1066
    %1070 = vrot.lane.b32.xlu0 %v662, 32
    %v1071 = vpop.permute.xlu0 %1070
    %1072 = vrot.lane.b32.xlu0 %v677, 32
    %v1073 = vpop.permute.xlu0 %1072
    %1074 = vrot.lane.b32.xlu0 %v678, 32
    %v1075 = vpop.permute.xlu0 %1074
    %1076 = vrot.lane.b32.xlu0 %v679, 32
    %v1077 = vpop.permute.xlu0 %1076
    %1078 = vrot.lane.b32.xlu0 %v680, 32
    %v1079 = vpop.permute.xlu0 %1078
    %v1081 = vsel %vm681, %v1071, 0
    %v1084 = vsel %vm681, %v1073, 0
    %v1087 = vsel %vm681, %v1075, 0
    %v1090 = vsel %vm681, %v1077, 0
    %v1093 = vsel %vm681, %v1079, 0
    %1095 = vmatpush.bf16.xpose.msra.mxu0 0
    %1096 = vmatpush.bf16.xpose.msra.mxu0 0
    %1097 = vmatpush.bf16.xpose.msra.mxu0 0
    %1098 = vmatpush.bf16.xpose.msra.mxu0 0
    %1099 = vmatpush.bf16.xpose.msra.mxu0 %v1093
    %1100 = vmatpush.bf16.xpose.msra.mxu0 %v1090
    %1101 = vmatpush.bf16.xpose.msra.mxu0 %v1087
    %1102 = vmatpush.bf16.xpose.msra.mxu0 %v1084
    %1103 = vmatmul.bf16.gmra.mxu0 %v1081
    %v1104 = vpop.f32.mrf.mxu0
    %v1105 = vadd.f32 0.0, %v1104
    %v1106 = vpop.f32.mrf.mxu0
    %v1107 = vadd.f32 0.0, %v1106
    %1108 = vdwg.mxu0
    %v1109 = vmul.f32 %v1105, 0.17677669
    %v1110 = vmul.f32 %v1107, 0.17677669
    %v1111 = vsel %vm713, %v1109, -inf
    %1112 = vmax.xlane.f32.xlu0 %v1111
    %v1113 = vpop.xlane.xlu0 %1112
    %v1114 = vsel %vm713, %v1110, -inf
    %1115 = vmax.xlane.f32.xlu0 %v1114
    %v1116 = vpop.xlane.xlu0 %1115
    %v1117 = vsub.f32 %v1109, %v1113
    %v1118 = vsub.f32 %v1110, %v1116
    %v1119 = vmul.f32 %v1117, 1.442695
    %v1120 = vpow.pop %v1119
    %v1121 = vmul.f32 %v1118, 1.442695
    %v1122 = vpow.pop %v1121
    %v1123 = vsel %vm713, %v1120, 0.0
    %1124 = vadd.xlane.f32.xlu0 %v1123
    %v1125 = vpop.xlane.xlu0 %1124
    %v1126 = vsel %vm713, %v1122, 0.0
    %1127 = vadd.xlane.f32.xlu0 %v1126
    %v1128 = vpop.xlane.xlu0 %1127
    %v1129 = vrcp.pop %v1125
    %v1130 = vrcp.pop %v1128
    %v1131 = vmul.f32 %v1120, %v1129
    %v1132 = vmul.f32 %v1122, %v1130
    %v1133 = vpack.c.bf16 %v1132, %v1131
    %1134 = vrot.lane.b32.xlu0 %v753, 32
    %v1135 = vpop.permute.xlu0 %1134
    %1136 = vrot.lane.b32.xlu0 %v754, 32
    %v1137 = vpop.permute.xlu0 %1136
    %1138 = vrot.lane.b32.xlu0 %v755, 32
    %v1139 = vpop.permute.xlu0 %1138
    %1140 = vrot.lane.b32.xlu0 %v756, 32
    %v1141 = vpop.permute.xlu0 %1140
    %v1147 = vsel %vm713, %v1133, 0
    %1149 = vmatpush.bf16.msra.mxu0 0
    %1150 = vmatpush.bf16.msra.mxu0 0
    %1151 = vmatpush.bf16.msra.mxu0 0
    %1152 = vmatpush.bf16.msra.mxu0 0
    %1153 = vmatpush.bf16.msra.mxu0 %v1141
    %1154 = vmatpush.bf16.msra.mxu0 %v1139
    %1155 = vmatpush.bf16.msra.mxu0 %v1137
    %1156 = vmatpush.bf16.msra.mxu0 %v1135
    %1157 = vmatmul.bf16.gmra.mxu0 %v1147
    %v1158 = vpop.f32.mrf.mxu0
    %v1159 = vadd.f32 0.0, %v1158
    %v1160 = vpop.f32.mrf.mxu0
    %v1161 = vadd.f32 0.0, %v1160
    %1162 = vdwg.mxu0
    %v1163 = vpack.c.bf16 %v1161, %v1159
    %s1164 = scalar_lea.vmem %s6, 48
    %v1165 = vld [vmem:[%s1164] sm:$0xf]
    %v1166 = vld [vmem:[%s1164 + $0x4] sm:$0xf]
    %v1167 = vld [vmem:[%s1164 + $0x8] sm:$0xf]
    %v1168 = vld [vmem:[%s1164 + $0xc] sm:$0xf]
    %v1173 = vunpack.c.l.b16 %v1165
    %v1174 = vunpack.c.l.b16 %v1166
    %v1175 = vunpack.c.l.b16 %v1167
    %v1176 = vunpack.c.l.b16 %v1168
    %v1177 = vpack.c.b16 %v1174, %v1173
    %v1178 = vpack.c.b16 %v1176, %v1175
    %v1182 = vsel %vm681, %v1163, 0
    %1184 = vmatpush.bf16.msra.mxu0 0
    %1185 = vmatpush.bf16.msra.mxu0 0
    %1186 = vmatpush.bf16.msra.mxu0 0
    %1187 = vmatpush.bf16.msra.mxu0 0
    %1188 = vmatpush.bf16.msra.mxu0 0
    %1189 = vmatpush.bf16.msra.mxu0 0
    %1190 = vmatpush.bf16.msra.mxu0 %v1178
    %1191 = vmatpush.bf16.msra.mxu0 %v1177
    %1192 = vmatmul.bf16.gmra.mxu0 %v1182
    %v1193 = vpop.f32.mrf.mxu0
    %v1194 = vadd.f32 0.0, %v1193
    %v1195 = vpop.f32.mrf.mxu0
    %v1196 = vadd.f32 0.0, %v1195
    %1197 = vdwg.mxu0
    %v1198 = vadd.f32 %v1068, %v1194
    %v1199 = vadd.f32 %v1069, %v1196
    %v1200 = vadd.f32 %v383, %v1198
    %v1201 = vadd.f32 %v384, %v1199
    %1202 = vst [vmem:[#allocation2] sm:$0xff] %v1200
    %1203 = vst [vmem:[#allocation2 + $0x8] sm:$0xff] %v1201
    %v1204 = vpack.c.bf16 %v1201, %v1200
    %v1205 = vld [vmem:[%s7] sm:$0xf]
    %v1206 = vld [vmem:[%s7 + $0x4] sm:$0xf]
    %v1207 = vld [vmem:[%s7 + $0x8] sm:$0xf]
    %v1208 = vld [vmem:[%s7 + $0xc] sm:$0xf]
    %v1209 = vld [vmem:[%s7 + $0x10] sm:$0xf]
    %v1210 = vld [vmem:[%s7 + $0x14] sm:$0xf]
    %v1211 = vld [vmem:[%s7 + $0x18] sm:$0xf]
    %v1212 = vld [vmem:[%s7 + $0x1c] sm:$0xf]
    %v1213 = vld [vmem:[%s7 + $0x20] sm:$0xf]
    %v1214 = vld [vmem:[%s7 + $0x24] sm:$0xf]
    %v1215 = vld [vmem:[%s7 + $0x28] sm:$0xf]
    %v1216 = vld [vmem:[%s7 + $0x2c] sm:$0xf]
    %v1217 = vld [vmem:[%s7 + $0x30] sm:$0xf]
    %v1218 = vld [vmem:[%s7 + $0x34] sm:$0xf]
    %v1219 = vld [vmem:[%s7 + $0x38] sm:$0xf]
    %v1220 = vld [vmem:[%s7 + $0x3c] sm:$0xf]
    %v1221 = vld [vmem:[%s8] sm:$0x1]
    %v1223 = vperm.slane %v1221, 0
    %v1241 = vunpack.c.l.b16 %v1205
    %v1242 = vunpack.c.l.b16 %v1206
    %v1243 = vunpack.c.l.b16 %v1207
    %v1244 = vunpack.c.l.b16 %v1208
    %v1245 = vunpack.c.l.b16 %v1209
    %v1246 = vunpack.c.l.b16 %v1210
    %v1247 = vunpack.c.l.b16 %v1211
    %v1248 = vunpack.c.l.b16 %v1212
    %v1249 = vunpack.c.l.b16 %v1213
    %v1250 = vunpack.c.l.b16 %v1214
    %v1251 = vunpack.c.l.b16 %v1215
    %v1252 = vunpack.c.l.b16 %v1216
    %v1253 = vunpack.c.l.b16 %v1217
    %v1254 = vunpack.c.l.b16 %v1218
    %v1255 = vunpack.c.l.b16 %v1219
    %v1256 = vunpack.c.l.b16 %v1220
    %v1257 = vpack.c.b16 %v1242, %v1241
    %v1258 = vpack.c.b16 %v1244, %v1243
    %v1259 = vpack.c.b16 %v1246, %v1245
    %v1260 = vpack.c.b16 %v1248, %v1247
    %v1261 = vpack.c.b16 %v1250, %v1249
    %v1262 = vpack.c.b16 %v1252, %v1251
    %v1263 = vpack.c.b16 %v1254, %v1253
    %v1264 = vpack.c.b16 %v1256, %v1255
    %1273 = vmatpush.bf16.msra.mxu0 %v1264
    %1274 = vmatpush.bf16.msra.mxu0 %v1263
    %1275 = vmatpush.bf16.msra.mxu0 %v1262
    %1276 = vmatpush.bf16.msra.mxu0 %v1261
    %1277 = vmatpush.bf16.msra.mxu0 %v1260
    %1278 = vmatpush.bf16.msra.mxu0 %v1259
    %1279 = vmatpush.bf16.msra.mxu0 %v1258
    %1280 = vmatpush.bf16.msra.mxu0 %v1257
    %1281 = vmatmul.bf16.gmra.mxu0 %v1204
    %v1282 = vpop.f32.mrf.mxu0
    %v1283 = vadd.f32 %v1223, %v1282
    %v1284 = vpop.f32.mrf.mxu0
    %v1285 = vadd.f32 %v1223, %v1284
    %1286 = vdwg.mxu0
    %1287 = vst [vmem:[%s10] sm:$0xff] %v1283
    %1288 = vst [vmem:[%s10 + $0x8] sm:$0xff] %v1285
    // Predicated region
    $region38: #{roi_attention_box_head.1} parent=1 // pred_check
      _
    $region39: #{roi_attention_box_head.1} parent=1 // pred_check_branch
      %1290 = sbr.rel (0) target = $region41
    $region40: #{roi_attention_box_head.1} parent=1 // pred_region
      %1292 = vsyncadd [#allocation3], 0
      %s1293 = sshll.u32 [#allocation2], 4
      %s1294 = int_to_ptr.vmem [resolvable:$true] %s1293
      %s1295 = sshll.u32 %s9, 4
      %s1296 = int_to_ptr.hbm [resolvable:$true] %s1295
      %1301 = dma.vmem_to_hbm [thread:$0]  %s1294, 256, %s1296, [#allocation3], 128, 128, 8
    $region41: #{roi_attention_box_head.1} parent=1 // pred_fallthru
      _
    // Predicated region
    $region42: #{roi_attention_box_head.1} parent=1 // pred_check
      _
    $region43: #{roi_attention_box_head.1} parent=1 // pred_check_branch
      %1303 = sbr.rel (0) target = $region45
    $region44: #{roi_attention_box_head.1} parent=1 // pred_region
      _
    $region45: #{roi_attention_box_head.1} parent=1 // pred_fallthru
      _
    // Predicated region
    $region46: #{roi_attention_box_head.1} parent=1 // pred_check
      _
    $region47: #{roi_attention_box_head.1} parent=1 // pred_check_branch
      %1305 = sbr.rel (0) target = $region49
    $region48: #{roi_attention_box_head.1} parent=1 // pred_region
      %1307 = dma.done [#allocation3], 256
    $region49: #{roi_attention_box_head.1} parent=1 // pred_fallthru
      _
    // Predicated region
    $region50: #{roi_attention_box_head.1} parent=1 // pred_check
      _
    $region51: #{roi_attention_box_head.1} parent=1 // pred_check_branch
      %1309 = sbr.rel (0) target = $region53
    $region52: #{roi_attention_box_head.1} parent=1 // pred_region
      _
    $region53: #{roi_attention_box_head.1} parent=1 // pred_fallthru
      _
    %1310 = vsyncpa [#allocation3], 1

</llo_original>
